<compile_context>
chip_gen: v5e
topology: v5e:2x2
jax: 0.10.0
libtpu: 0.0.40
codegen_flags: <defaults>
</compile_context>

<pallas_src>
import functools

import jax
import jax.numpy as jnp
from jax import lax
from jax.experimental import pallas as pl
from jax.experimental.pallas import tpu as pltpu


def _embed_gather_kernel(ids_ref, emb_hbm, out_ref, rows, sems, *,
                         tn, vocab_size, scale):
    """Embed `tn` tokens per grid step.

    ids_ref : (N,)      int32, SMEM (scalar prefetch) -- all token ids
    emb_hbm : (V, D)    table ref left in HBM (pl.ANY)
    out_ref : (tn, D)   VMEM output block (auto-pipelined)
    rows    : (2*tn, D) VMEM scratch: double-buffered gathered rows
    sems    : (2*tn,)   DMA semaphores (one per row slot)
    """
    i = pl.program_id(0)
    nb = pl.num_programs(0)
    slot = i % 2                      # which half of `rows` holds block i
    unroll = tn <= 32                 # keep unrolled code small for big tiles

    def start_fetch(block, slot_):
        base = block * tn

        def issue(t, carry):
            tok = ids_ref[base + t]
            # Clamp so an out-of-range id can never become an OOB HBM DMA.
            tok = jnp.minimum(jnp.maximum(tok, 0), vocab_size - 1)
            pltpu.make_async_copy(
                emb_hbm.at[tok],                  # (D,) row in HBM
                rows.at[slot_ * tn + t],          # (D,) row in VMEM scratch
                sems.at[slot_ * tn + t],
            ).start()
            return carry

        lax.fori_loop(0, tn, issue, 0, unroll=unroll)

    # Prime the pipeline: block 0 -> slot 0 on the first step.
    @pl.when(i == 0)
    def _():
        start_fetch(0, 0)

    # Prefetch the next block into the other slot before waiting on this one.
    @pl.when(i + 1 < nb)
    def _():
        start_fetch(i + 1, 1 - slot)

    # Wait for all rows of the current block.
    def wait_row(t, carry):
        pltpu.make_async_copy(
            emb_hbm.at[0],                        # shape-only descriptor
            rows.at[slot * tn + t],
            sems.at[slot * tn + t],
        ).wait()
        return carry

    lax.fori_loop(0, tn, wait_row, 0, unroll=unroll)

    blk = rows[pl.ds(slot * tn, tn), :]           # (tn, D) gathered rows
    out_ref[...] = (blk * scale).astype(out_ref.dtype)


def _pick_tn(n_tokens, target=128):
    for cand in (target, 128, 64, 32, 16, 8):
        if cand <= n_tokens and n_tokens % cand == 0:
            return cand
    return n_tokens


def input_embedding(x, emb_table, *, tn=None):
    """Pallas equivalent of InputEmbedding.forward.

    x:          (B, S) int32 token ids in [0, vocab_size)
    emb_table:  (vocab_size, d_model) float32
    returns:    (B, S, d_model) float32
    """
    B, S = x.shape
    V, D = emb_table.shape
    N = B * S
    if tn is None:
        tn = _pick_tn(N)
    assert N % tn == 0, "token count must be divisible by the token tile"
    num_blocks = N // tn
    scale = float(D) ** 0.5

    ids_flat = x.reshape(N).astype(jnp.int32)
    itemsize = emb_table.dtype.itemsize

    # Memory-bound gather: ~N*D reads + N*D writes, no FLOPs worth counting.
    cost = pl.CostEstimate(
        flops=0,
        transcendentals=0,
        bytes_accessed=2 * N * D * itemsize + N * 4,
    )

    out = pl.pallas_call(
        functools.partial(_embed_gather_kernel, tn=tn, vocab_size=V,
                          scale=scale),
        out_shape=jax.ShapeDtypeStruct((N, D), emb_table.dtype),
        grid_spec=pltpu.PrefetchScalarGridSpec(
            num_scalar_prefetch=1,                       # ids -> SMEM
            grid=(num_blocks,),
            in_specs=[
                pl.BlockSpec(memory_space=pl.ANY),       # table stays in HBM
            ],
            out_specs=pl.BlockSpec((tn, D), lambda i, ids: (i, 0)),
            scratch_shapes=[
                pltpu.VMEM((2 * tn, D), emb_table.dtype),  # double buffer
                pltpu.SemaphoreType.DMA((2 * tn,)),
            ],
        ),
        compiler_params=pltpu.CompilerParams(
            # Manual cross-step double-buffering => steps are order-dependent.
            dimension_semantics=("arbitrary",)),
        cost_estimate=cost,
    )(ids_flat, emb_table)

    return out.reshape(B, S, D)


if __name__ == "__main__":
    # Small, deterministic setup consistent with the module:
    #   vocab_size=64, d_model=32, batch=2, seq=8
    vocab_size, d_model = 64, 32
    B, S = 2, 8

    key = jax.random.PRNGKey(0)
    k_emb, k_ids = jax.random.split(key)

    # nn.Embedding default init ~ N(0, 1)
    emb_table = jax.random.normal(k_emb, (vocab_size, d_model), dtype=jnp.float32)
    x = jax.random.randint(k_ids, (B, S), 0, vocab_size, dtype=jnp.int32)

    ref = jnp.take(emb_table, x, axis=0) * (d_model ** 0.5)

    # Multi-block path (2 grid steps) -> exercises the double-buffered prefetch.
    out = jax.block_until_ready(input_embedding(x, emb_table, tn=8))
    assert out.shape == (B, S, d_model)
    assert jnp.allclose(out, ref, atol=1e-6, rtol=1e-6)

    # Default tile (single block at this toy size).
    out2 = jax.block_until_ready(input_embedding(x, emb_table))
    assert jnp.allclose(out2, ref, atol=1e-6, rtol=1e-6)

    print("KERNEL_OK")
</pallas_src>

<mosaic_0001>
module attributes {stable_mosaic.version = 11 : i64} {
  func.func @_embed_gather_kernel(%arg0: i32, %arg1: memref<16xi32, #tpu.memory_space<smem>>, %arg2: memref<64x32xf32, #tpu.memory_space<any>>, %arg3: memref<8x32xf32, #tpu.memory_space<vmem>>, %arg4: memref<16x32xf32, #tpu.memory_space<vmem>>, %arg5: memref<16x!tpu.dma_semaphore, #tpu.memory_space<semaphore_mem>>) attributes {dimension_semantics = [#tpu.dimension_semantics<arbitrary>], iteration_bounds = array<i64: 2>, scalar_prefetch = 1 : i64, scratch_operands = 2 : i64, tpu.core_type = #tpu.core_type<tc>, window_params = [{}, {transform_indices = @transform_1, window_bounds = array<i64: 8, 32>}]} {
    %c2_i32 = arith.constant 2 : i32
    %c0_i32 = arith.constant 0 : i32
    %0 = arith.cmpi eq, %c2_i32, %c0_i32 : i32
    %c1_i32 = arith.constant 1 : i32
    %1 = arith.select %0, %c1_i32, %c2_i32 : i32
    %2 = arith.remsi %arg0, %1 : i32
    %c0_i32_0 = arith.constant 0 : i32
    %3 = arith.cmpi ne, %2, %c0_i32_0 : i32
    %c0_i32_1 = arith.constant 0 : i32
    %4 = arith.cmpi slt, %2, %c0_i32_1 : i32
    %c0_i32_2 = arith.constant 0 : i32
    %5 = arith.cmpi slt, %1, %c0_i32_2 : i32
    %6 = arith.xori %4, %5 : i1
    %7 = arith.andi %6, %3 : i1
    %8 = arith.addi %2, %1 : i32
    %9 = arith.select %7, %8, %2 : i32
    %c0_i32_3 = arith.constant 0 : i32
    %10 = arith.cmpi eq, %arg0, %c0_i32_3 : i32
    %11 = arith.extui %10 : i1 to i32
    %c0_i32_4 = arith.constant 0 : i32
    %12 = arith.cmpi ne, %11, %c0_i32_4 : i32
    scf.if %12 {
      %c0_i32_54 = arith.constant 0 : i32
      %c0_i32_55 = arith.constant 0 : i32
      %103 = arith.addi %c0_i32_55, %c0_i32_54 : i32
      %104 = arith.index_cast %103 : i32 to index
      %105 = memref.load %arg1[%104] : memref<16xi32, #tpu.memory_space<smem>>
      %c0_i32_56 = arith.constant 0 : i32
      %106 = arith.maxsi %105, %c0_i32_56 : i32
      %c63_i32 = arith.constant 63 : i32
      %107 = arith.minsi %106, %c63_i32 : i32
      %c0_i32_57 = arith.constant 0 : i32
      %108 = arith.addi %c0_i32_57, %c0_i32_54 : i32
      %c0_i32_58 = arith.constant 0 : i32
      %109 = arith.addi %c0_i32_58, %c0_i32_54 : i32
      %c0_i32_59 = arith.constant 0 : i32
      %110 = tpu.memref_slice %arg2[%107, %c0_i32_59] : memref<64x32xf32, #tpu.memory_space<any>> -> memref<1x32xf32, #tpu.memory_space<any>>
      %111 = tpu.memref_squeeze %110 : memref<1x32xf32, #tpu.memory_space<any>> -> memref<32xf32, #tpu.memory_space<any>>
      %c0_i32_60 = arith.constant 0 : i32
      %112 = tpu.memref_slice %arg4[%108, %c0_i32_60] : memref<16x32xf32, #tpu.memory_space<vmem>> -> memref<1x32xf32, #tpu.memory_space<vmem>>
      %113 = tpu.memref_squeeze %112 : memref<1x32xf32, #tpu.memory_space<vmem>> -> memref<32xf32, #tpu.memory_space<vmem>>
      %114 = tpu.memref_slice %arg5[%109] : memref<16x!tpu.dma_semaphore, #tpu.memory_space<semaphore_mem>> -> memref<1x!tpu.dma_semaphore, #tpu.memory_space<semaphore_mem>>
      %115 = tpu.memref_squeeze %114 : memref<1x!tpu.dma_semaphore, #tpu.memory_space<semaphore_mem>> -> memref<!tpu.dma_semaphore, #tpu.memory_space<semaphore_mem>>
      tpu.enqueue_dma source(%111 : memref<32xf32, #tpu.memory_space<any>>) target(%113 : memref<32xf32, #tpu.memory_space<vmem>>) target_semaphore(%115 : memref<!tpu.dma_semaphore, #tpu.memory_space<semaphore_mem>>)
      %c1_i32_61 = arith.constant 1 : i32
      %c0_i32_62 = arith.constant 0 : i32
      %116 = arith.addi %c0_i32_62, %c1_i32_61 : i32
      %117 = arith.index_cast %116 : i32 to index
      %118 = memref.load %arg1[%117] : memref<16xi32, #tpu.memory_space<smem>>
      %c0_i32_63 = arith.constant 0 : i32
      %119 = arith.maxsi %118, %c0_i32_63 : i32
      %c63_i32_64 = arith.constant 63 : i32
      %120 = arith.minsi %119, %c63_i32_64 : i32
      %c0_i32_65 = arith.constant 0 : i32
      %121 = arith.addi %c0_i32_65, %c1_i32_61 : i32
      %c0_i32_66 = arith.constant 0 : i32
      %122 = arith.addi %c0_i32_66, %c1_i32_61 : i32
      %c0_i32_67 = arith.constant 0 : i32
      %123 = tpu.memref_slice %arg2[%120, %c0_i32_67] : memref<64x32xf32, #tpu.memory_space<any>> -> memref<1x32xf32, #tpu.memory_space<any>>
      %124 = tpu.memref_squeeze %123 : memref<1x32xf32, #tpu.memory_space<any>> -> memref<32xf32, #tpu.memory_space<any>>
      %c0_i32_68 = arith.constant 0 : i32
      %125 = tpu.memref_slice %arg4[%121, %c0_i32_68] : memref<16x32xf32, #tpu.memory_space<vmem>> -> memref<1x32xf32, #tpu.memory_space<vmem>>
      %126 = tpu.memref_squeeze %125 : memref<1x32xf32, #tpu.memory_space<vmem>> -> memref<32xf32, #tpu.memory_space<vmem>>
      %127 = tpu.memref_slice %arg5[%122] : memref<16x!tpu.dma_semaphore, #tpu.memory_space<semaphore_mem>> -> memref<1x!tpu.dma_semaphore, #tpu.memory_space<semaphore_mem>>
      %128 = tpu.memref_squeeze %127 : memref<1x!tpu.dma_semaphore, #tpu.memory_space<semaphore_mem>> -> memref<!tpu.dma_semaphore, #tpu.memory_space<semaphore_mem>>
      tpu.enqueue_dma source(%124 : memref<32xf32, #tpu.memory_space<any>>) target(%126 : memref<32xf32, #tpu.memory_space<vmem>>) target_semaphore(%128 : memref<!tpu.dma_semaphore, #tpu.memory_space<semaphore_mem>>)
      %c2_i32_69 = arith.constant 2 : i32
      %c0_i32_70 = arith.constant 0 : i32
      %129 = arith.addi %c0_i32_70, %c2_i32_69 : i32
      %130 = arith.index_cast %129 : i32 to index
      %131 = memref.load %arg1[%130] : memref<16xi32, #tpu.memory_space<smem>>
      %c0_i32_71 = arith.constant 0 : i32
      %132 = arith.maxsi %131, %c0_i32_71 : i32
      %c63_i32_72 = arith.constant 63 : i32
      %133 = arith.minsi %132, %c63_i32_72 : i32
      %c0_i32_73 = arith.constant 0 : i32
      %134 = arith.addi %c0_i32_73, %c2_i32_69 : i32
      %c0_i32_74 = arith.constant 0 : i32
      %135 = arith.addi %c0_i32_74, %c2_i32_69 : i32
      %c0_i32_75 = arith.constant 0 : i32
      %136 = tpu.memref_slice %arg2[%133, %c0_i32_75] : memref<64x32xf32, #tpu.memory_space<any>> -> memref<1x32xf32, #tpu.memory_space<any>>
      %137 = tpu.memref_squeeze %136 : memref<1x32xf32, #tpu.memory_space<any>> -> memref<32xf32, #tpu.memory_space<any>>
      %c0_i32_76 = arith.constant 0 : i32
      %138 = tpu.memref_slice %arg4[%134, %c0_i32_76] : memref<16x32xf32, #tpu.memory_space<vmem>> -> memref<1x32xf32, #tpu.memory_space<vmem>>
      %139 = tpu.memref_squeeze %138 : memref<1x32xf32, #tpu.memory_space<vmem>> -> memref<32xf32, #tpu.memory_space<vmem>>
      %140 = tpu.memref_slice %arg5[%135] : memref<16x!tpu.dma_semaphore, #tpu.memory_space<semaphore_mem>> -> memref<1x!tpu.dma_semaphore, #tpu.memory_space<semaphore_mem>>
      %141 = tpu.memref_squeeze %140 : memref<1x!tpu.dma_semaphore, #tpu.memory_space<semaphore_mem>> -> memref<!tpu.dma_semaphore, #tpu.memory_space<semaphore_mem>>
      tpu.enqueue_dma source(%137 : memref<32xf32, #tpu.memory_space<any>>) target(%139 : memref<32xf32, #tpu.memory_space<vmem>>) target_semaphore(%141 : memref<!tpu.dma_semaphore, #tpu.memory_space<semaphore_mem>>)
      %c3_i32_77 = arith.constant 3 : i32
      %c0_i32_78 = arith.constant 0 : i32
      %142 = arith.addi %c0_i32_78, %c3_i32_77 : i32
      %143 = arith.index_cast %142 : i32 to index
      %144 = memref.load %arg1[%143] : memref<16xi32, #tpu.memory_space<smem>>
      %c0_i32_79 = arith.constant 0 : i32
      %145 = arith.maxsi %144, %c0_i32_79 : i32
      %c63_i32_80 = arith.constant 63 : i32
      %146 = arith.minsi %145, %c63_i32_80 : i32
      %c0_i32_81 = arith.constant 0 : i32
      %147 = arith.addi %c0_i32_81, %c3_i32_77 : i32
      %c0_i32_82 = arith.constant 0 : i32
      %148 = arith.addi %c0_i32_82, %c3_i32_77 : i32
      %c0_i32_83 = arith.constant 0 : i32
      %149 = tpu.memref_slice %arg2[%146, %c0_i32_83] : memref<64x32xf32, #tpu.memory_space<any>> -> memref<1x32xf32, #tpu.memory_space<any>>
      %150 = tpu.memref_squeeze %149 : memref<1x32xf32, #tpu.memory_space<any>> -> memref<32xf32, #tpu.memory_space<any>>
      %c0_i32_84 = arith.constant 0 : i32
      %151 = tpu.memref_slice %arg4[%147, %c0_i32_84] : memref<16x32xf32, #tpu.memory_space<vmem>> -> memref<1x32xf32, #tpu.memory_space<vmem>>
      %152 = tpu.memref_squeeze %151 : memref<1x32xf32, #tpu.memory_space<vmem>> -> memref<32xf32, #tpu.memory_space<vmem>>
      %153 = tpu.memref_slice %arg5[%148] : memref<16x!tpu.dma_semaphore, #tpu.memory_space<semaphore_mem>> -> memref<1x!tpu.dma_semaphore, #tpu.memory_space<semaphore_mem>>
      %154 = tpu.memref_squeeze %153 : memref<1x!tpu.dma_semaphore, #tpu.memory_space<semaphore_mem>> -> memref<!tpu.dma_semaphore, #tpu.memory_space<semaphore_mem>>
      tpu.enqueue_dma source(%150 : memref<32xf32, #tpu.memory_space<any>>) target(%152 : memref<32xf32, #tpu.memory_space<vmem>>) target_semaphore(%154 : memref<!tpu.dma_semaphore, #tpu.memory_space<semaphore_mem>>)
      %c4_i32_85 = arith.constant 4 : i32
      %c0_i32_86 = arith.constant 0 : i32
      %155 = arith.addi %c0_i32_86, %c4_i32_85 : i32
      %156 = arith.index_cast %155 : i32 to index
      %157 = memref.load %arg1[%156] : memref<16xi32, #tpu.memory_space<smem>>
      %c0_i32_87 = arith.constant 0 : i32
      %158 = arith.maxsi %157, %c0_i32_87 : i32
      %c63_i32_88 = arith.constant 63 : i32
      %159 = arith.minsi %158, %c63_i32_88 : i32
      %c0_i32_89 = arith.constant 0 : i32
      %160 = arith.addi %c0_i32_89, %c4_i32_85 : i32
      %c0_i32_90 = arith.constant 0 : i32
      %161 = arith.addi %c0_i32_90, %c4_i32_85 : i32
      %c0_i32_91 = arith.constant 0 : i32
      %162 = tpu.memref_slice %arg2[%159, %c0_i32_91] : memref<64x32xf32, #tpu.memory_space<any>> -> memref<1x32xf32, #tpu.memory_space<any>>
      %163 = tpu.memref_squeeze %162 : memref<1x32xf32, #tpu.memory_space<any>> -> memref<32xf32, #tpu.memory_space<any>>
      %c0_i32_92 = arith.constant 0 : i32
      %164 = tpu.memref_slice %arg4[%160, %c0_i32_92] : memref<16x32xf32, #tpu.memory_space<vmem>> -> memref<1x32xf32, #tpu.memory_space<vmem>>
      %165 = tpu.memref_squeeze %164 : memref<1x32xf32, #tpu.memory_space<vmem>> -> memref<32xf32, #tpu.memory_space<vmem>>
      %166 = tpu.memref_slice %arg5[%161] : memref<16x!tpu.dma_semaphore, #tpu.memory_space<semaphore_mem>> -> memref<1x!tpu.dma_semaphore, #tpu.memory_space<semaphore_mem>>
      %167 = tpu.memref_squeeze %166 : memref<1x!tpu.dma_semaphore, #tpu.memory_space<semaphore_mem>> -> memref<!tpu.dma_semaphore, #tpu.memory_space<semaphore_mem>>
      tpu.enqueue_dma source(%163 : memref<32xf32, #tpu.memory_space<any>>) target(%165 : memref<32xf32, #tpu.memory_space<vmem>>) target_semaphore(%167 : memref<!tpu.dma_semaphore, #tpu.memory_space<semaphore_mem>>)
      %c5_i32_93 = arith.constant 5 : i32
      %c0_i32_94 = arith.constant 0 : i32
      %168 = arith.addi %c0_i32_94, %c5_i32_93 : i32
      %169 = arith.index_cast %168 : i32 to index
      %170 = memref.load %arg1[%169] : memref<16xi32, #tpu.memory_space<smem>>
      %c0_i32_95 = arith.constant 0 : i32
      %171 = arith.maxsi %170, %c0_i32_95 : i32
      %c63_i32_96 = arith.constant 63 : i32
      %172 = arith.minsi %171, %c63_i32_96 : i32
      %c0_i32_97 = arith.constant 0 : i32
      %173 = arith.addi %c0_i32_97, %c5_i32_93 : i32
      %c0_i32_98 = arith.constant 0 : i32
      %174 = arith.addi %c0_i32_98, %c5_i32_93 : i32
      %c0_i32_99 = arith.constant 0 : i32
      %175 = tpu.memref_slice %arg2[%172, %c0_i32_99] : memref<64x32xf32, #tpu.memory_space<any>> -> memref<1x32xf32, #tpu.memory_space<any>>
      %176 = tpu.memref_squeeze %175 : memref<1x32xf32, #tpu.memory_space<any>> -> memref<32xf32, #tpu.memory_space<any>>
      %c0_i32_100 = arith.constant 0 : i32
      %177 = tpu.memref_slice %arg4[%173, %c0_i32_100] : memref<16x32xf32, #tpu.memory_space<vmem>> -> memref<1x32xf32, #tpu.memory_space<vmem>>
      %178 = tpu.memref_squeeze %177 : memref<1x32xf32, #tpu.memory_space<vmem>> -> memref<32xf32, #tpu.memory_space<vmem>>
      %179 = tpu.memref_slice %arg5[%174] : memref<16x!tpu.dma_semaphore, #tpu.memory_space<semaphore_mem>> -> memref<1x!tpu.dma_semaphore, #tpu.memory_space<semaphore_mem>>
      %180 = tpu.memref_squeeze %179 : memref<1x!tpu.dma_semaphore, #tpu.memory_space<semaphore_mem>> -> memref<!tpu.dma_semaphore, #tpu.memory_space<semaphore_mem>>
      tpu.enqueue_dma source(%176 : memref<32xf32, #tpu.memory_space<any>>) target(%178 : memref<32xf32, #tpu.memory_space<vmem>>) target_semaphore(%180 : memref<!tpu.dma_semaphore, #tpu.memory_space<semaphore_mem>>)
      %c6_i32_101 = arith.constant 6 : i32
      %c0_i32_102 = arith.constant 0 : i32
      %181 = arith.addi %c0_i32_102, %c6_i32_101 : i32
      %182 = arith.index_cast %181 : i32 to index
      %183 = memref.load %arg1[%182] : memref<16xi32, #tpu.memory_space<smem>>
      %c0_i32_103 = arith.constant 0 : i32
      %184 = arith.maxsi %183, %c0_i32_103 : i32
      %c63_i32_104 = arith.constant 63 : i32
      %185 = arith.minsi %184, %c63_i32_104 : i32
      %c0_i32_105 = arith.constant 0 : i32
      %186 = arith.addi %c0_i32_105, %c6_i32_101 : i32
      %c0_i32_106 = arith.constant 0 : i32
      %187 = arith.addi %c0_i32_106, %c6_i32_101 : i32
      %c0_i32_107 = arith.constant 0 : i32
      %188 = tpu.memref_slice %arg2[%185, %c0_i32_107] : memref<64x32xf32, #tpu.memory_space<any>> -> memref<1x32xf32, #tpu.memory_space<any>>
      %189 = tpu.memref_squeeze %188 : memref<1x32xf32, #tpu.memory_space<any>> -> memref<32xf32, #tpu.memory_space<any>>
      %c0_i32_108 = arith.constant 0 : i32
      %190 = tpu.memref_slice %arg4[%186, %c0_i32_108] : memref<16x32xf32, #tpu.memory_space<vmem>> -> memref<1x32xf32, #tpu.memory_space<vmem>>
      %191 = tpu.memref_squeeze %190 : memref<1x32xf32, #tpu.memory_space<vmem>> -> memref<32xf32, #tpu.memory_space<vmem>>
      %192 = tpu.memref_slice %arg5[%187] : memref<16x!tpu.dma_semaphore, #tpu.memory_space<semaphore_mem>> -> memref<1x!tpu.dma_semaphore, #tpu.memory_space<semaphore_mem>>
      %193 = tpu.memref_squeeze %192 : memref<1x!tpu.dma_semaphore, #tpu.memory_space<semaphore_mem>> -> memref<!tpu.dma_semaphore, #tpu.memory_space<semaphore_mem>>
      tpu.enqueue_dma source(%189 : memref<32xf32, #tpu.memory_space<any>>) target(%191 : memref<32xf32, #tpu.memory_space<vmem>>) target_semaphore(%193 : memref<!tpu.dma_semaphore, #tpu.memory_space<semaphore_mem>>)
      %c7_i32_109 = arith.constant 7 : i32
      %c0_i32_110 = arith.constant 0 : i32
      %194 = arith.addi %c0_i32_110, %c7_i32_109 : i32
      %195 = arith.index_cast %194 : i32 to index
      %196 = memref.load %arg1[%195] : memref<16xi32, #tpu.memory_space<smem>>
      %c0_i32_111 = arith.constant 0 : i32
      %197 = arith.maxsi %196, %c0_i32_111 : i32
      %c63_i32_112 = arith.constant 63 : i32
      %198 = arith.minsi %197, %c63_i32_112 : i32
      %c0_i32_113 = arith.constant 0 : i32
      %199 = arith.addi %c0_i32_113, %c7_i32_109 : i32
      %c0_i32_114 = arith.constant 0 : i32
      %200 = arith.addi %c0_i32_114, %c7_i32_109 : i32
      %c0_i32_115 = arith.constant 0 : i32
      %201 = tpu.memref_slice %arg2[%198, %c0_i32_115] : memref<64x32xf32, #tpu.memory_space<any>> -> memref<1x32xf32, #tpu.memory_space<any>>
      %202 = tpu.memref_squeeze %201 : memref<1x32xf32, #tpu.memory_space<any>> -> memref<32xf32, #tpu.memory_space<any>>
      %c0_i32_116 = arith.constant 0 : i32
      %203 = tpu.memref_slice %arg4[%199, %c0_i32_116] : memref<16x32xf32, #tpu.memory_space<vmem>> -> memref<1x32xf32, #tpu.memory_space<vmem>>
      %204 = tpu.memref_squeeze %203 : memref<1x32xf32, #tpu.memory_space<vmem>> -> memref<32xf32, #tpu.memory_space<vmem>>
      %205 = tpu.memref_slice %arg5[%200] : memref<16x!tpu.dma_semaphore, #tpu.memory_space<semaphore_mem>> -> memref<1x!tpu.dma_semaphore, #tpu.memory_space<semaphore_mem>>
      %206 = tpu.memref_squeeze %205 : memref<1x!tpu.dma_semaphore, #tpu.memory_space<semaphore_mem>> -> memref<!tpu.dma_semaphore, #tpu.memory_space<semaphore_mem>>
      tpu.enqueue_dma source(%202 : memref<32xf32, #tpu.memory_space<any>>) target(%204 : memref<32xf32, #tpu.memory_space<vmem>>) target_semaphore(%206 : memref<!tpu.dma_semaphore, #tpu.memory_space<semaphore_mem>>)
      %c8_i32_117 = arith.constant 8 : i32
    } else {
    }
    %c1_i32_5 = arith.constant 1 : i32
    %13 = arith.addi %arg0, %c1_i32_5 : i32
    %c2_i32_6 = arith.constant 2 : i32
    %14 = arith.cmpi slt, %13, %c2_i32_6 : i32
    %15 = arith.extui %14 : i1 to i32
    %c0_i32_7 = arith.constant 0 : i32
    %16 = arith.cmpi ne, %15, %c0_i32_7 : i32
    scf.if %16 {
      %c1_i32_54 = arith.constant 1 : i32
      %103 = arith.addi %arg0, %c1_i32_54 : i32
      %c1_i32_55 = arith.constant 1 : i32
      %104 = arith.subi %c1_i32_55, %9 : i32
      %c8_i32_56 = arith.constant 8 : i32
      %105 = arith.muli %103, %c8_i32_56 : i32
      %c0_i32_57 = arith.constant 0 : i32
      %106 = arith.addi %105, %c0_i32_57 : i32
      %107 = arith.index_cast %106 : i32 to index
      %108 = memref.load %arg1[%107] : memref<16xi32, #tpu.memory_space<smem>>
      %c0_i32_58 = arith.constant 0 : i32
      %109 = arith.maxsi %108, %c0_i32_58 : i32
      %c63_i32 = arith.constant 63 : i32
      %110 = arith.minsi %109, %c63_i32 : i32
      %c8_i32_59 = arith.constant 8 : i32
      %111 = arith.muli %104, %c8_i32_59 : i32
      %112 = arith.addi %111, %c0_i32_57 : i32
      %c8_i32_60 = arith.constant 8 : i32
      %113 = arith.muli %104, %c8_i32_60 : i32
      %114 = arith.addi %113, %c0_i32_57 : i32
      %c0_i32_61 = arith.constant 0 : i32
      %115 = tpu.memref_slice %arg2[%110, %c0_i32_61] : memref<64x32xf32, #tpu.memory_space<any>> -> memref<1x32xf32, #tpu.memory_space<any>>
      %116 = tpu.memref_squeeze %115 : memref<1x32xf32, #tpu.memory_space<any>> -> memref<32xf32, #tpu.memory_space<any>>
      %c0_i32_62 = arith.constant 0 : i32
      %117 = tpu.memref_slice %arg4[%112, %c0_i32_62] : memref<16x32xf32, #tpu.memory_space<vmem>> -> memref<1x32xf32, #tpu.memory_space<vmem>>
      %118 = tpu.memref_squeeze %117 : memref<1x32xf32, #tpu.memory_space<vmem>> -> memref<32xf32, #tpu.memory_space<vmem>>
      %119 = tpu.memref_slice %arg5[%114] : memref<16x!tpu.dma_semaphore, #tpu.memory_space<semaphore_mem>> -> memref<1x!tpu.dma_semaphore, #tpu.memory_space<semaphore_mem>>
      %120 = tpu.memref_squeeze %119 : memref<1x!tpu.dma_semaphore, #tpu.memory_space<semaphore_mem>> -> memref<!tpu.dma_semaphore, #tpu.memory_space<semaphore_mem>>
      tpu.enqueue_dma source(%116 : memref<32xf32, #tpu.memory_space<any>>) target(%118 : memref<32xf32, #tpu.memory_space<vmem>>) target_semaphore(%120 : memref<!tpu.dma_semaphore, #tpu.memory_space<semaphore_mem>>)
      %c1_i32_63 = arith.constant 1 : i32
      %121 = arith.addi %105, %c1_i32_63 : i32
      %122 = arith.index_cast %121 : i32 to index
      %123 = memref.load %arg1[%122] : memref<16xi32, #tpu.memory_space<smem>>
      %c0_i32_64 = arith.constant 0 : i32
      %124 = arith.maxsi %123, %c0_i32_64 : i32
      %c63_i32_65 = arith.constant 63 : i32
      %125 = arith.minsi %124, %c63_i32_65 : i32
      %c8_i32_66 = arith.constant 8 : i32
      %126 = arith.muli %104, %c8_i32_66 : i32
      %127 = arith.addi %126, %c1_i32_63 : i32
      %c8_i32_67 = arith.constant 8 : i32
      %128 = arith.muli %104, %c8_i32_67 : i32
      %129 = arith.addi %128, %c1_i32_63 : i32
      %c0_i32_68 = arith.constant 0 : i32
      %130 = tpu.memref_slice %arg2[%125, %c0_i32_68] : memref<64x32xf32, #tpu.memory_space<any>> -> memref<1x32xf32, #tpu.memory_space<any>>
      %131 = tpu.memref_squeeze %130 : memref<1x32xf32, #tpu.memory_space<any>> -> memref<32xf32, #tpu.memory_space<any>>
      %c0_i32_69 = arith.constant 0 : i32
      %132 = tpu.memref_slice %arg4[%127, %c0_i32_69] : memref<16x32xf32, #tpu.memory_space<vmem>> -> memref<1x32xf32, #tpu.memory_space<vmem>>
      %133 = tpu.memref_squeeze %132 : memref<1x32xf32, #tpu.memory_space<vmem>> -> memref<32xf32, #tpu.memory_space<vmem>>
      %134 = tpu.memref_slice %arg5[%129] : memref<16x!tpu.dma_semaphore, #tpu.memory_space<semaphore_mem>> -> memref<1x!tpu.dma_semaphore, #tpu.memory_space<semaphore_mem>>
      %135 = tpu.memref_squeeze %134 : memref<1x!tpu.dma_semaphore, #tpu.memory_space<semaphore_mem>> -> memref<!tpu.dma_semaphore, #tpu.memory_space<semaphore_mem>>
      tpu.enqueue_dma source(%131 : memref<32xf32, #tpu.memory_space<any>>) target(%133 : memref<32xf32, #tpu.memory_space<vmem>>) target_semaphore(%135 : memref<!tpu.dma_semaphore, #tpu.memory_space<semaphore_mem>>)
      %c2_i32_70 = arith.constant 2 : i32
      %136 = arith.addi %105, %c2_i32_70 : i32
      %137 = arith.index_cast %136 : i32 to index
      %138 = memref.load %arg1[%137] : memref<16xi32, #tpu.memory_space<smem>>
      %c0_i32_71 = arith.constant 0 : i32
      %139 = arith.maxsi %138, %c0_i32_71 : i32
      %c63_i32_72 = arith.constant 63 : i32
      %140 = arith.minsi %139, %c63_i32_72 : i32
      %c8_i32_73 = arith.constant 8 : i32
      %141 = arith.muli %104, %c8_i32_73 : i32
      %142 = arith.addi %141, %c2_i32_70 : i32
      %c8_i32_74 = arith.constant 8 : i32
      %143 = arith.muli %104, %c8_i32_74 : i32
      %144 = arith.addi %143, %c2_i32_70 : i32
      %c0_i32_75 = arith.constant 0 : i32
      %145 = tpu.memref_slice %arg2[%140, %c0_i32_75] : memref<64x32xf32, #tpu.memory_space<any>> -> memref<1x32xf32, #tpu.memory_space<any>>
      %146 = tpu.memref_squeeze %145 : memref<1x32xf32, #tpu.memory_space<any>> -> memref<32xf32, #tpu.memory_space<any>>
      %c0_i32_76 = arith.constant 0 : i32
      %147 = tpu.memref_slice %arg4[%142, %c0_i32_76] : memref<16x32xf32, #tpu.memory_space<vmem>> -> memref<1x32xf32, #tpu.memory_space<vmem>>
      %148 = tpu.memref_squeeze %147 : memref<1x32xf32, #tpu.memory_space<vmem>> -> memref<32xf32, #tpu.memory_space<vmem>>
      %149 = tpu.memref_slice %arg5[%144] : memref<16x!tpu.dma_semaphore, #tpu.memory_space<semaphore_mem>> -> memref<1x!tpu.dma_semaphore, #tpu.memory_space<semaphore_mem>>
      %150 = tpu.memref_squeeze %149 : memref<1x!tpu.dma_semaphore, #tpu.memory_space<semaphore_mem>> -> memref<!tpu.dma_semaphore, #tpu.memory_space<semaphore_mem>>
      tpu.enqueue_dma source(%146 : memref<32xf32, #tpu.memory_space<any>>) target(%148 : memref<32xf32, #tpu.memory_space<vmem>>) target_semaphore(%150 : memref<!tpu.dma_semaphore, #tpu.memory_space<semaphore_mem>>)
      %c3_i32_77 = arith.constant 3 : i32
      %151 = arith.addi %105, %c3_i32_77 : i32
      %152 = arith.index_cast %151 : i32 to index
      %153 = memref.load %arg1[%152] : memref<16xi32, #tpu.memory_space<smem>>
      %c0_i32_78 = arith.constant 0 : i32
      %154 = arith.maxsi %153, %c0_i32_78 : i32
      %c63_i32_79 = arith.constant 63 : i32
      %155 = arith.minsi %154, %c63_i32_79 : i32
      %c8_i32_80 = arith.constant 8 : i32
      %156 = arith.muli %104, %c8_i32_80 : i32
      %157 = arith.addi %156, %c3_i32_77 : i32
      %c8_i32_81 = arith.constant 8 : i32
      %158 = arith.muli %104, %c8_i32_81 : i32
      %159 = arith.addi %158, %c3_i32_77 : i32
      %c0_i32_82 = arith.constant 0 : i32
      %160 = tpu.memref_slice %arg2[%155, %c0_i32_82] : memref<64x32xf32, #tpu.memory_space<any>> -> memref<1x32xf32, #tpu.memory_space<any>>
      %161 = tpu.memref_squeeze %160 : memref<1x32xf32, #tpu.memory_space<any>> -> memref<32xf32, #tpu.memory_space<any>>
      %c0_i32_83 = arith.constant 0 : i32
      %162 = tpu.memref_slice %arg4[%157, %c0_i32_83] : memref<16x32xf32, #tpu.memory_space<vmem>> -> memref<1x32xf32, #tpu.memory_space<vmem>>
      %163 = tpu.memref_squeeze %162 : memref<1x32xf32, #tpu.memory_space<vmem>> -> memref<32xf32, #tpu.memory_space<vmem>>
      %164 = tpu.memref_slice %arg5[%159] : memref<16x!tpu.dma_semaphore, #tpu.memory_space<semaphore_mem>> -> memref<1x!tpu.dma_semaphore, #tpu.memory_space<semaphore_mem>>
      %165 = tpu.memref_squeeze %164 : memref<1x!tpu.dma_semaphore, #tpu.memory_space<semaphore_mem>> -> memref<!tpu.dma_semaphore, #tpu.memory_space<semaphore_mem>>
      tpu.enqueue_dma source(%161 : memref<32xf32, #tpu.memory_space<any>>) target(%163 : memref<32xf32, #tpu.memory_space<vmem>>) target_semaphore(%165 : memref<!tpu.dma_semaphore, #tpu.memory_space<semaphore_mem>>)
      %c4_i32_84 = arith.constant 4 : i32
      %166 = arith.addi %105, %c4_i32_84 : i32
      %167 = arith.index_cast %166 : i32 to index
      %168 = memref.load %arg1[%167] : memref<16xi32, #tpu.memory_space<smem>>
      %c0_i32_85 = arith.constant 0 : i32
      %169 = arith.maxsi %168, %c0_i32_85 : i32
      %c63_i32_86 = arith.constant 63 : i32
      %170 = arith.minsi %169, %c63_i32_86 : i32
      %c8_i32_87 = arith.constant 8 : i32
      %171 = arith.muli %104, %c8_i32_87 : i32
      %172 = arith.addi %171, %c4_i32_84 : i32
      %c8_i32_88 = arith.constant 8 : i32
      %173 = arith.muli %104, %c8_i32_88 : i32
      %174 = arith.addi %173, %c4_i32_84 : i32
      %c0_i32_89 = arith.constant 0 : i32
      %175 = tpu.memref_slice %arg2[%170, %c0_i32_89] : memref<64x32xf32, #tpu.memory_space<any>> -> memref<1x32xf32, #tpu.memory_space<any>>
      %176 = tpu.memref_squeeze %175 : memref<1x32xf32, #tpu.memory_space<any>> -> memref<32xf32, #tpu.memory_space<any>>
      %c0_i32_90 = arith.constant 0 : i32
      %177 = tpu.memref_slice %arg4[%172, %c0_i32_90] : memref<16x32xf32, #tpu.memory_space<vmem>> -> memref<1x32xf32, #tpu.memory_space<vmem>>
      %178 = tpu.memref_squeeze %177 : memref<1x32xf32, #tpu.memory_space<vmem>> -> memref<32xf32, #tpu.memory_space<vmem>>
      %179 = tpu.memref_slice %arg5[%174] : memref<16x!tpu.dma_semaphore, #tpu.memory_space<semaphore_mem>> -> memref<1x!tpu.dma_semaphore, #tpu.memory_space<semaphore_mem>>
      %180 = tpu.memref_squeeze %179 : memref<1x!tpu.dma_semaphore, #tpu.memory_space<semaphore_mem>> -> memref<!tpu.dma_semaphore, #tpu.memory_space<semaphore_mem>>
      tpu.enqueue_dma source(%176 : memref<32xf32, #tpu.memory_space<any>>) target(%178 : memref<32xf32, #tpu.memory_space<vmem>>) target_semaphore(%180 : memref<!tpu.dma_semaphore, #tpu.memory_space<semaphore_mem>>)
      %c5_i32_91 = arith.constant 5 : i32
      %181 = arith.addi %105, %c5_i32_91 : i32
      %182 = arith.index_cast %181 : i32 to index
      %183 = memref.load %arg1[%182] : memref<16xi32, #tpu.memory_space<smem>>
      %c0_i32_92 = arith.constant 0 : i32
      %184 = arith.maxsi %183, %c0_i32_92 : i32
      %c63_i32_93 = arith.constant 63 : i32
      %185 = arith.minsi %184, %c63_i32_93 : i32
      %c8_i32_94 = arith.constant 8 : i32
      %186 = arith.muli %104, %c8_i32_94 : i32
      %187 = arith.addi %186, %c5_i32_91 : i32
      %c8_i32_95 = arith.constant 8 : i32
      %188 = arith.muli %104, %c8_i32_95 : i32
      %189 = arith.addi %188, %c5_i32_91 : i32
      %c0_i32_96 = arith.constant 0 : i32
      %190 = tpu.memref_slice %arg2[%185, %c0_i32_96] : memref<64x32xf32, #tpu.memory_space<any>> -> memref<1x32xf32, #tpu.memory_space<any>>
      %191 = tpu.memref_squeeze %190 : memref<1x32xf32, #tpu.memory_space<any>> -> memref<32xf32, #tpu.memory_space<any>>
      %c0_i32_97 = arith.constant 0 : i32
      %192 = tpu.memref_slice %arg4[%187, %c0_i32_97] : memref<16x32xf32, #tpu.memory_space<vmem>> -> memref<1x32xf32, #tpu.memory_space<vmem>>
      %193 = tpu.memref_squeeze %192 : memref<1x32xf32, #tpu.memory_space<vmem>> -> memref<32xf32, #tpu.memory_space<vmem>>
      %194 = tpu.memref_slice %arg5[%189] : memref<16x!tpu.dma_semaphore, #tpu.memory_space<semaphore_mem>> -> memref<1x!tpu.dma_semaphore, #tpu.memory_space<semaphore_mem>>
      %195 = tpu.memref_squeeze %194 : memref<1x!tpu.dma_semaphore, #tpu.memory_space<semaphore_mem>> -> memref<!tpu.dma_semaphore, #tpu.memory_space<semaphore_mem>>
      tpu.enqueue_dma source(%191 : memref<32xf32, #tpu.memory_space<any>>) target(%193 : memref<32xf32, #tpu.memory_space<vmem>>) target_semaphore(%195 : memref<!tpu.dma_semaphore, #tpu.memory_space<semaphore_mem>>)
      %c6_i32_98 = arith.constant 6 : i32
      %196 = arith.addi %105, %c6_i32_98 : i32
      %197 = arith.index_cast %196 : i32 to index
      %198 = memref.load %arg1[%197] : memref<16xi32, #tpu.memory_space<smem>>
      %c0_i32_99 = arith.constant 0 : i32
      %199 = arith.maxsi %198, %c0_i32_99 : i32
      %c63_i32_100 = arith.constant 63 : i32
      %200 = arith.minsi %199, %c63_i32_100 : i32
      %c8_i32_101 = arith.constant 8 : i32
      %201 = arith.muli %104, %c8_i32_101 : i32
      %202 = arith.addi %201, %c6_i32_98 : i32
      %c8_i32_102 = arith.constant 8 : i32
      %203 = arith.muli %104, %c8_i32_102 : i32
      %204 = arith.addi %203, %c6_i32_98 : i32
      %c0_i32_103 = arith.constant 0 : i32
      %205 = tpu.memref_slice %arg2[%200, %c0_i32_103] : memref<64x32xf32, #tpu.memory_space<any>> -> memref<1x32xf32, #tpu.memory_space<any>>
      %206 = tpu.memref_squeeze %205 : memref<1x32xf32, #tpu.memory_space<any>> -> memref<32xf32, #tpu.memory_space<any>>
      %c0_i32_104 = arith.constant 0 : i32
      %207 = tpu.memref_slice %arg4[%202, %c0_i32_104] : memref<16x32xf32, #tpu.memory_space<vmem>> -> memref<1x32xf32, #tpu.memory_space<vmem>>
      %208 = tpu.memref_squeeze %207 : memref<1x32xf32, #tpu.memory_space<vmem>> -> memref<32xf32, #tpu.memory_space<vmem>>
      %209 = tpu.memref_slice %arg5[%204] : memref<16x!tpu.dma_semaphore, #tpu.memory_space<semaphore_mem>> -> memref<1x!tpu.dma_semaphore, #tpu.memory_space<semaphore_mem>>
      %210 = tpu.memref_squeeze %209 : memref<1x!tpu.dma_semaphore, #tpu.memory_space<semaphore_mem>> -> memref<!tpu.dma_semaphore, #tpu.memory_space<semaphore_mem>>
      tpu.enqueue_dma source(%206 : memref<32xf32, #tpu.memory_space<any>>) target(%208 : memref<32xf32, #tpu.memory_space<vmem>>) target_semaphore(%210 : memref<!tpu.dma_semaphore, #tpu.memory_space<semaphore_mem>>)
      %c7_i32_105 = arith.constant 7 : i32
      %211 = arith.addi %105, %c7_i32_105 : i32
      %212 = arith.index_cast %211 : i32 to index
      %213 = memref.load %arg1[%212] : memref<16xi32, #tpu.memory_space<smem>>
      %c0_i32_106 = arith.constant 0 : i32
      %214 = arith.maxsi %213, %c0_i32_106 : i32
      %c63_i32_107 = arith.constant 63 : i32
      %215 = arith.minsi %214, %c63_i32_107 : i32
      %c8_i32_108 = arith.constant 8 : i32
      %216 = arith.muli %104, %c8_i32_108 : i32
      %217 = arith.addi %216, %c7_i32_105 : i32
      %c8_i32_109 = arith.constant 8 : i32
      %218 = arith.muli %104, %c8_i32_109 : i32
      %219 = arith.addi %218, %c7_i32_105 : i32
      %c0_i32_110 = arith.constant 0 : i32
      %220 = tpu.memref_slice %arg2[%215, %c0_i32_110] : memref<64x32xf32, #tpu.memory_space<any>> -> memref<1x32xf32, #tpu.memory_space<any>>
      %221 = tpu.memref_squeeze %220 : memref<1x32xf32, #tpu.memory_space<any>> -> memref<32xf32, #tpu.memory_space<any>>
      %c0_i32_111 = arith.constant 0 : i32
      %222 = tpu.memref_slice %arg4[%217, %c0_i32_111] : memref<16x32xf32, #tpu.memory_space<vmem>> -> memref<1x32xf32, #tpu.memory_space<vmem>>
      %223 = tpu.memref_squeeze %222 : memref<1x32xf32, #tpu.memory_space<vmem>> -> memref<32xf32, #tpu.memory_space<vmem>>
      %224 = tpu.memref_slice %arg5[%219] : memref<16x!tpu.dma_semaphore, #tpu.memory_space<semaphore_mem>> -> memref<1x!tpu.dma_semaphore, #tpu.memory_space<semaphore_mem>>
      %225 = tpu.memref_squeeze %224 : memref<1x!tpu.dma_semaphore, #tpu.memory_space<semaphore_mem>> -> memref<!tpu.dma_semaphore, #tpu.memory_space<semaphore_mem>>
      tpu.enqueue_dma source(%221 : memref<32xf32, #tpu.memory_space<any>>) target(%223 : memref<32xf32, #tpu.memory_space<vmem>>) target_semaphore(%225 : memref<!tpu.dma_semaphore, #tpu.memory_space<semaphore_mem>>)
      %c8_i32_112 = arith.constant 8 : i32
    } else {
    }
    %c0_i32_8 = arith.constant 0 : i32
    %c8_i32 = arith.constant 8 : i32
    %17 = arith.muli %9, %c8_i32 : i32
    %18 = arith.addi %17, %c0_i32_8 : i32
    %c8_i32_9 = arith.constant 8 : i32
    %19 = arith.muli %9, %c8_i32_9 : i32
    %20 = arith.addi %19, %c0_i32_8 : i32
    %c0_i32_10 = arith.constant 0 : i32
    %c0_i32_11 = arith.constant 0 : i32
    %21 = tpu.memref_slice %arg2[%c0_i32_10, %c0_i32_11] : memref<64x32xf32, #tpu.memory_space<any>> -> memref<1x32xf32, #tpu.memory_space<any>>
    %22 = tpu.memref_squeeze %21 : memref<1x32xf32, #tpu.memory_space<any>> -> memref<32xf32, #tpu.memory_space<any>>
    %c0_i32_12 = arith.constant 0 : i32
    %23 = tpu.memref_slice %arg4[%18, %c0_i32_12] : memref<16x32xf32, #tpu.memory_space<vmem>> -> memref<1x32xf32, #tpu.memory_space<vmem>>
    %24 = tpu.memref_squeeze %23 : memref<1x32xf32, #tpu.memory_space<vmem>> -> memref<32xf32, #tpu.memory_space<vmem>>
    %25 = tpu.memref_slice %arg5[%20] : memref<16x!tpu.dma_semaphore, #tpu.memory_space<semaphore_mem>> -> memref<1x!tpu.dma_semaphore, #tpu.memory_space<semaphore_mem>>
    %26 = tpu.memref_squeeze %25 : memref<1x!tpu.dma_semaphore, #tpu.memory_space<semaphore_mem>> -> memref<!tpu.dma_semaphore, #tpu.memory_space<semaphore_mem>>
    tpu.wait_dma2 semaphore(%26 : memref<!tpu.dma_semaphore, #tpu.memory_space<semaphore_mem>>) src(%22 : memref<32xf32, #tpu.memory_space<any>>) dst(%24 : memref<32xf32, #tpu.memory_space<vmem>>)
    %c1_i32_13 = arith.constant 1 : i32
    %c8_i32_14 = arith.constant 8 : i32
    %27 = arith.muli %9, %c8_i32_14 : i32
    %28 = arith.addi %27, %c1_i32_13 : i32
    %c8_i32_15 = arith.constant 8 : i32
    %29 = arith.muli %9, %c8_i32_15 : i32
    %30 = arith.addi %29, %c1_i32_13 : i32
    %c0_i32_16 = arith.constant 0 : i32
    %c0_i32_17 = arith.constant 0 : i32
    %31 = tpu.memref_slice %arg2[%c0_i32_16, %c0_i32_17] : memref<64x32xf32, #tpu.memory_space<any>> -> memref<1x32xf32, #tpu.memory_space<any>>
    %32 = tpu.memref_squeeze %31 : memref<1x32xf32, #tpu.memory_space<any>> -> memref<32xf32, #tpu.memory_space<any>>
    %c0_i32_18 = arith.constant 0 : i32
    %33 = tpu.memref_slice %arg4[%28, %c0_i32_18] : memref<16x32xf32, #tpu.memory_space<vmem>> -> memref<1x32xf32, #tpu.memory_space<vmem>>
    %34 = tpu.memref_squeeze %33 : memref<1x32xf32, #tpu.memory_space<vmem>> -> memref<32xf32, #tpu.memory_space<vmem>>
    %35 = tpu.memref_slice %arg5[%30] : memref<16x!tpu.dma_semaphore, #tpu.memory_space<semaphore_mem>> -> memref<1x!tpu.dma_semaphore, #tpu.memory_space<semaphore_mem>>
    %36 = tpu.memref_squeeze %35 : memref<1x!tpu.dma_semaphore, #tpu.memory_space<semaphore_mem>> -> memref<!tpu.dma_semaphore, #tpu.memory_space<semaphore_mem>>
    tpu.wait_dma2 semaphore(%36 : memref<!tpu.dma_semaphore, #tpu.memory_space<semaphore_mem>>) src(%32 : memref<32xf32, #tpu.memory_space<any>>) dst(%34 : memref<32xf32, #tpu.memory_space<vmem>>)
    %c2_i32_19 = arith.constant 2 : i32
    %c8_i32_20 = arith.constant 8 : i32
    %37 = arith.muli %9, %c8_i32_20 : i32
    %38 = arith.addi %37, %c2_i32_19 : i32
    %c8_i32_21 = arith.constant 8 : i32
    %39 = arith.muli %9, %c8_i32_21 : i32
    %40 = arith.addi %39, %c2_i32_19 : i32
    %c0_i32_22 = arith.constant 0 : i32
    %c0_i32_23 = arith.constant 0 : i32
    %41 = tpu.memref_slice %arg2[%c0_i32_22, %c0_i32_23] : memref<64x32xf32, #tpu.memory_space<any>> -> memref<1x32xf32, #tpu.memory_space<any>>
    %42 = tpu.memref_squeeze %41 : memref<1x32xf32, #tpu.memory_space<any>> -> memref<32xf32, #tpu.memory_space<any>>
    %c0_i32_24 = arith.constant 0 : i32
    %43 = tpu.memref_slice %arg4[%38, %c0_i32_24] : memref<16x32xf32, #tpu.memory_space<vmem>> -> memref<1x32xf32, #tpu.memory_space<vmem>>
    %44 = tpu.memref_squeeze %43 : memref<1x32xf32, #tpu.memory_space<vmem>> -> memref<32xf32, #tpu.memory_space<vmem>>
    %45 = tpu.memref_slice %arg5[%40] : memref<16x!tpu.dma_semaphore, #tpu.memory_space<semaphore_mem>> -> memref<1x!tpu.dma_semaphore, #tpu.memory_space<semaphore_mem>>
    %46 = tpu.memref_squeeze %45 : memref<1x!tpu.dma_semaphore, #tpu.memory_space<semaphore_mem>> -> memref<!tpu.dma_semaphore, #tpu.memory_space<semaphore_mem>>
    tpu.wait_dma2 semaphore(%46 : memref<!tpu.dma_semaphore, #tpu.memory_space<semaphore_mem>>) src(%42 : memref<32xf32, #tpu.memory_space<any>>) dst(%44 : memref<32xf32, #tpu.memory_space<vmem>>)
    %c3_i32 = arith.constant 3 : i32
    %c8_i32_25 = arith.constant 8 : i32
    %47 = arith.muli %9, %c8_i32_25 : i32
    %48 = arith.addi %47, %c3_i32 : i32
    %c8_i32_26 = arith.constant 8 : i32
    %49 = arith.muli %9, %c8_i32_26 : i32
    %50 = arith.addi %49, %c3_i32 : i32
    %c0_i32_27 = arith.constant 0 : i32
    %c0_i32_28 = arith.constant 0 : i32
    %51 = tpu.memref_slice %arg2[%c0_i32_27, %c0_i32_28] : memref<64x32xf32, #tpu.memory_space<any>> -> memref<1x32xf32, #tpu.memory_space<any>>
    %52 = tpu.memref_squeeze %51 : memref<1x32xf32, #tpu.memory_space<any>> -> memref<32xf32, #tpu.memory_space<any>>
    %c0_i32_29 = arith.constant 0 : i32
    %53 = tpu.memref_slice %arg4[%48, %c0_i32_29] : memref<16x32xf32, #tpu.memory_space<vmem>> -> memref<1x32xf32, #tpu.memory_space<vmem>>
    %54 = tpu.memref_squeeze %53 : memref<1x32xf32, #tpu.memory_space<vmem>> -> memref<32xf32, #tpu.memory_space<vmem>>
    %55 = tpu.memref_slice %arg5[%50] : memref<16x!tpu.dma_semaphore, #tpu.memory_space<semaphore_mem>> -> memref<1x!tpu.dma_semaphore, #tpu.memory_space<semaphore_mem>>
    %56 = tpu.memref_squeeze %55 : memref<1x!tpu.dma_semaphore, #tpu.memory_space<semaphore_mem>> -> memref<!tpu.dma_semaphore, #tpu.memory_space<semaphore_mem>>
    tpu.wait_dma2 semaphore(%56 : memref<!tpu.dma_semaphore, #tpu.memory_space<semaphore_mem>>) src(%52 : memref<32xf32, #tpu.memory_space<any>>) dst(%54 : memref<32xf32, #tpu.memory_space<vmem>>)
    %c4_i32 = arith.constant 4 : i32
    %c8_i32_30 = arith.constant 8 : i32
    %57 = arith.muli %9, %c8_i32_30 : i32
    %58 = arith.addi %57, %c4_i32 : i32
    %c8_i32_31 = arith.constant 8 : i32
    %59 = arith.muli %9, %c8_i32_31 : i32
    %60 = arith.addi %59, %c4_i32 : i32
    %c0_i32_32 = arith.constant 0 : i32
    %c0_i32_33 = arith.constant 0 : i32
    %61 = tpu.memref_slice %arg2[%c0_i32_32, %c0_i32_33] : memref<64x32xf32, #tpu.memory_space<any>> -> memref<1x32xf32, #tpu.memory_space<any>>
    %62 = tpu.memref_squeeze %61 : memref<1x32xf32, #tpu.memory_space<any>> -> memref<32xf32, #tpu.memory_space<any>>
    %c0_i32_34 = arith.constant 0 : i32
    %63 = tpu.memref_slice %arg4[%58, %c0_i32_34] : memref<16x32xf32, #tpu.memory_space<vmem>> -> memref<1x32xf32, #tpu.memory_space<vmem>>
    %64 = tpu.memref_squeeze %63 : memref<1x32xf32, #tpu.memory_space<vmem>> -> memref<32xf32, #tpu.memory_space<vmem>>
    %65 = tpu.memref_slice %arg5[%60] : memref<16x!tpu.dma_semaphore, #tpu.memory_space<semaphore_mem>> -> memref<1x!tpu.dma_semaphore, #tpu.memory_space<semaphore_mem>>
    %66 = tpu.memref_squeeze %65 : memref<1x!tpu.dma_semaphore, #tpu.memory_space<semaphore_mem>> -> memref<!tpu.dma_semaphore, #tpu.memory_space<semaphore_mem>>
    tpu.wait_dma2 semaphore(%66 : memref<!tpu.dma_semaphore, #tpu.memory_space<semaphore_mem>>) src(%62 : memref<32xf32, #tpu.memory_space<any>>) dst(%64 : memref<32xf32, #tpu.memory_space<vmem>>)
    %c5_i32 = arith.constant 5 : i32
    %c8_i32_35 = arith.constant 8 : i32
    %67 = arith.muli %9, %c8_i32_35 : i32
    %68 = arith.addi %67, %c5_i32 : i32
    %c8_i32_36 = arith.constant 8 : i32
    %69 = arith.muli %9, %c8_i32_36 : i32
    %70 = arith.addi %69, %c5_i32 : i32
    %c0_i32_37 = arith.constant 0 : i32
    %c0_i32_38 = arith.constant 0 : i32
    %71 = tpu.memref_slice %arg2[%c0_i32_37, %c0_i32_38] : memref<64x32xf32, #tpu.memory_space<any>> -> memref<1x32xf32, #tpu.memory_space<any>>
    %72 = tpu.memref_squeeze %71 : memref<1x32xf32, #tpu.memory_space<any>> -> memref<32xf32, #tpu.memory_space<any>>
    %c0_i32_39 = arith.constant 0 : i32
    %73 = tpu.memref_slice %arg4[%68, %c0_i32_39] : memref<16x32xf32, #tpu.memory_space<vmem>> -> memref<1x32xf32, #tpu.memory_space<vmem>>
    %74 = tpu.memref_squeeze %73 : memref<1x32xf32, #tpu.memory_space<vmem>> -> memref<32xf32, #tpu.memory_space<vmem>>
    %75 = tpu.memref_slice %arg5[%70] : memref<16x!tpu.dma_semaphore, #tpu.memory_space<semaphore_mem>> -> memref<1x!tpu.dma_semaphore, #tpu.memory_space<semaphore_mem>>
    %76 = tpu.memref_squeeze %75 : memref<1x!tpu.dma_semaphore, #tpu.memory_space<semaphore_mem>> -> memref<!tpu.dma_semaphore, #tpu.memory_space<semaphore_mem>>
    tpu.wait_dma2 semaphore(%76 : memref<!tpu.dma_semaphore, #tpu.memory_space<semaphore_mem>>) src(%72 : memref<32xf32, #tpu.memory_space<any>>) dst(%74 : memref<32xf32, #tpu.memory_space<vmem>>)
    %c6_i32 = arith.constant 6 : i32
    %c8_i32_40 = arith.constant 8 : i32
    %77 = arith.muli %9, %c8_i32_40 : i32
    %78 = arith.addi %77, %c6_i32 : i32
    %c8_i32_41 = arith.constant 8 : i32
    %79 = arith.muli %9, %c8_i32_41 : i32
    %80 = arith.addi %79, %c6_i32 : i32
    %c0_i32_42 = arith.constant 0 : i32
    %c0_i32_43 = arith.constant 0 : i32
    %81 = tpu.memref_slice %arg2[%c0_i32_42, %c0_i32_43] : memref<64x32xf32, #tpu.memory_space<any>> -> memref<1x32xf32, #tpu.memory_space<any>>
    %82 = tpu.memref_squeeze %81 : memref<1x32xf32, #tpu.memory_space<any>> -> memref<32xf32, #tpu.memory_space<any>>
    %c0_i32_44 = arith.constant 0 : i32
    %83 = tpu.memref_slice %arg4[%78, %c0_i32_44] : memref<16x32xf32, #tpu.memory_space<vmem>> -> memref<1x32xf32, #tpu.memory_space<vmem>>
    %84 = tpu.memref_squeeze %83 : memref<1x32xf32, #tpu.memory_space<vmem>> -> memref<32xf32, #tpu.memory_space<vmem>>
    %85 = tpu.memref_slice %arg5[%80] : memref<16x!tpu.dma_semaphore, #tpu.memory_space<semaphore_mem>> -> memref<1x!tpu.dma_semaphore, #tpu.memory_space<semaphore_mem>>
    %86 = tpu.memref_squeeze %85 : memref<1x!tpu.dma_semaphore, #tpu.memory_space<semaphore_mem>> -> memref<!tpu.dma_semaphore, #tpu.memory_space<semaphore_mem>>
    tpu.wait_dma2 semaphore(%86 : memref<!tpu.dma_semaphore, #tpu.memory_space<semaphore_mem>>) src(%82 : memref<32xf32, #tpu.memory_space<any>>) dst(%84 : memref<32xf32, #tpu.memory_space<vmem>>)
    %c7_i32 = arith.constant 7 : i32
    %c8_i32_45 = arith.constant 8 : i32
    %87 = arith.muli %9, %c8_i32_45 : i32
    %88 = arith.addi %87, %c7_i32 : i32
    %c8_i32_46 = arith.constant 8 : i32
    %89 = arith.muli %9, %c8_i32_46 : i32
    %90 = arith.addi %89, %c7_i32 : i32
    %c0_i32_47 = arith.constant 0 : i32
    %c0_i32_48 = arith.constant 0 : i32
    %91 = tpu.memref_slice %arg2[%c0_i32_47, %c0_i32_48] : memref<64x32xf32, #tpu.memory_space<any>> -> memref<1x32xf32, #tpu.memory_space<any>>
    %92 = tpu.memref_squeeze %91 : memref<1x32xf32, #tpu.memory_space<any>> -> memref<32xf32, #tpu.memory_space<any>>
    %c0_i32_49 = arith.constant 0 : i32
    %93 = tpu.memref_slice %arg4[%88, %c0_i32_49] : memref<16x32xf32, #tpu.memory_space<vmem>> -> memref<1x32xf32, #tpu.memory_space<vmem>>
    %94 = tpu.memref_squeeze %93 : memref<1x32xf32, #tpu.memory_space<vmem>> -> memref<32xf32, #tpu.memory_space<vmem>>
    %95 = tpu.memref_slice %arg5[%90] : memref<16x!tpu.dma_semaphore, #tpu.memory_space<semaphore_mem>> -> memref<1x!tpu.dma_semaphore, #tpu.memory_space<semaphore_mem>>
    %96 = tpu.memref_squeeze %95 : memref<1x!tpu.dma_semaphore, #tpu.memory_space<semaphore_mem>> -> memref<!tpu.dma_semaphore, #tpu.memory_space<semaphore_mem>>
    tpu.wait_dma2 semaphore(%96 : memref<!tpu.dma_semaphore, #tpu.memory_space<semaphore_mem>>) src(%92 : memref<32xf32, #tpu.memory_space<any>>) dst(%94 : memref<32xf32, #tpu.memory_space<vmem>>)
    %c8_i32_50 = arith.constant 8 : i32
    %c8_i32_51 = arith.constant 8 : i32
    %97 = arith.muli %9, %c8_i32_51 : i32
    %98 = arith.index_cast %97 : i32 to index
    %c0 = arith.constant 0 : index
    %99 = vector.load %arg4[%98, %c0] : memref<16x32xf32, #tpu.memory_space<vmem>>, vector<8x32xf32>
    %cst = arith.constant 5.65685415 : f32
    %100 = vector.broadcast %cst : f32 to vector<8x32xf32>
    %101 = arith.mulf %99, %100 : vector<8x32xf32>
    %c0_52 = arith.constant 0 : index
    %c0_53 = arith.constant 0 : index
    %102 = vector.load %arg3[%c0_52, %c0_53] : memref<8x32xf32, #tpu.memory_space<vmem>>, vector<8x32xf32>
    tpu.vector_store %arg3[%c0_52, %c0_53], %101 {strides = array<i32>} : memref<8x32xf32, #tpu.memory_space<vmem>>, vector<8x32xf32>,
    return
  }
  func.func @transform_1(%arg0: i32, %arg1: memref<16xi32, #tpu.memory_space<smem>>) -> (i32, i32) {
    %c0_i32 = arith.constant 0 : i32
    %c0_i32_0 = arith.constant 0 : i32
    return %arg0, %c0_i32 : i32, i32
  }
}

</mosaic_0001>

<llo_original>
// kernel: tpu_custom_call.1
$region0: #{tpu_custom_call.1}
  #allocation0 [shape = 'u32[]', space=smem, size = 0x4, offset = 0x4, fixed_abs, tag = 'smem constant byte address 0x4 - core index']
  #allocation1 [shape = 'u32[72,128]{1,0:T(1,128)}', space=vmem, size = 0x9000, scoped, tag = 'internal scratch']
  #allocation2 [shape = 'f32[16,32]{1,0:T(8,128)}', space=vmem, size = 0x2000, scoped, tag = 'scratch operand']
  #allocation3 [shape = 's32[16]{0}', space=sflag, size = 0x40, scoped, tag = 'scratch operand']
  #allocation4 [shape = 's32[1]{0}', space=sflag, size = 0x4, scoped, tag = 'scoped memory for tpu_custom_call.1']
  #allocation5 [shape = 'u8[512]{0}', space=smem, size = 0x200, scoped, tag = 'prefetched SMEM operand 0']
  #allocation8 [shape = 's32[]', space=sflag, size = 0x4, offset = 0, fixed_abs, tag = 'sflag constant byte address 0x0 - dummy sync flag']
  #allocation9 [shape = 's32[]', space=sflag, size = 0x4, offset = 0, fixed_abs, tag = 'sflag constant byte address 0x0 - dummy sync flag']
  #allocation10 [shape = 's32[]', space=sflag, size = 0x4, offset = 0, fixed_abs, tag = 'sflag constant byte address 0x0 - dummy sync flag']
  #allocation11 [shape = 's32[]', space=sflag, size = 0x4, offset = 0, fixed_abs, tag = 'sflag constant byte address 0x0 - dummy sync flag']
  #allocation12 [shape = 's32[]', space=sflag, size = 0x4, offset = 0, fixed_abs, tag = 'sflag constant byte address 0x0 - dummy sync flag']
  #allocation13 [shape = 's32[]', space=sflag, size = 0x4, offset = 0, fixed_abs, tag = 'sflag constant byte address 0x0 - dummy sync flag']
  #allocation14 [shape = 's32[]', space=sflag, size = 0x4, offset = 0, fixed_abs, tag = 'sflag constant byte address 0x0 - dummy sync flag']
  #allocation15 [shape = 's32[]', space=sflag, size = 0x4, offset = 0, fixed_abs, tag = 'sflag constant byte address 0x0 - dummy sync flag']
  #allocation16 [shape = 's32[]', space=sflag, size = 0x4, offset = 0, fixed_abs, tag = 'sflag constant byte address 0x0 - dummy sync flag']
  #allocation17 [shape = 's32[]', space=sflag, size = 0x4, offset = 0, fixed_abs, tag = 'sflag constant byte address 0x0 - dummy sync flag']
  #allocation18 [shape = 's32[]', space=sflag, size = 0x4, offset = 0, fixed_abs, tag = 'sflag constant byte address 0x0 - dummy sync flag']
  #allocation19 [shape = 's32[]', space=sflag, size = 0x4, offset = 0, fixed_abs, tag = 'sflag constant byte address 0x0 - dummy sync flag']
  #allocation20 [shape = 's32[]', space=sflag, size = 0x4, offset = 0, fixed_abs, tag = 'sflag constant byte address 0x0 - dummy sync flag']
  #allocation21 [shape = 's32[]', space=sflag, size = 0x4, offset = 0, fixed_abs, tag = 'sflag constant byte address 0x0 - dummy sync flag']
  #allocation22 [shape = 's32[]', space=sflag, size = 0x4, offset = 0, fixed_abs, tag = 'sflag constant byte address 0x0 - dummy sync flag']
  #allocation23 [shape = 's32[]', space=sflag, size = 0x4, offset = 0, fixed_abs, tag = 'sflag constant byte address 0x0 - dummy sync flag']
  %s0 = inlined_call_operand.vmem [shape: s32[16], index: 0, kind: input, shape index: {}]
  %s1 = inlined_call_operand.vmem [shape: f32[64,32], index: 1, kind: input, shape index: {}]
  %s2 = inlined_call_operand.hbm [shape: f32[16,32], index: 2, kind: output, shape index: {}]
  %s3 = sld [smem:[#allocation0]]
  $region513: #{tpu_custom_call.1} parent=0
    _
  %s5 = ssub.s32 1, %s3
  %s6 = scalar_select 0, %s5, %s3
  %s8 = sshll.u32 %s0, 4
  %s9 = int_to_ptr.vmem [resolvable:$true] %s8
  %11 = dma.vmem_to_smem %s9, 16, [#allocation5], [#allocation4]
  %13 = dma.done [#allocation4], 16
  %14 = sfence
  $region1: #{tpu_custom_call.1} parent=0
    #allocation6 [shape = 'u8[8192]{0}', space=vmem, size = 0x2000, scoped, tag = 'output window, operand 0']
    #allocation7 [shape = 's32[2]{0}', space=sflag, size = 0x8, scoped, tag = 'scoped memory for tpu_custom_call.1']
    %15 = vsyncpa [#allocation7], 0
    %s16 = scalar_lea.sflag [#allocation7], 1
    %17 = vsyncpa %s16, 0
    loop: start=0, step=1, limit=3
    $region2: #{tpu_custom_call.1} parent=1 // loop_pre_header
      _
    $region3: #{tpu_custom_call.1} parent=1 // loop_header
      %s19 = sphi 0, %s23
      %p20 = scmp.ge.s32.totalorder %s19, 3
      %s28 = sphi 0, %s30
      %s31 = sphi 0, %s28
      %s41 = sphi 0, %s31
    $region4: #{tpu_custom_call.1} parent=1 // loop_header_branch
      %22 = sbr.rel (%p20) target = $region8
    $region5: #{tpu_custom_call.1} parent=1 // loop_body
      %s24 = ssub.s32 %s19, 1
      %s25 = sadd.s32 %s19, 1
      %s26 = ssub.s32 %s19, %s25
      %p27 = scmp.eq.s32.totalorder %s26, 0
      %s29 = sadd.s32 %s28, 1
      %s30 = scalar_select %p27, %s28, %s29
      %p32 = pneg %p27
      %p33 = scmp.eq.s32.totalorder %s19, 1
      %p34 = por %p32, %p33
      %p35 = scmp.ne.s32.totalorder %s28, %s31
      %p36 = scmp.eq.s32.totalorder %s19, 0
      %p37 = por %p35, %p36
      %p38 = scmp.ne.s32.totalorder %s28, %s31
      %p39 = scmp.eq.s32.totalorder %s24, 1
      %p40 = por %p38, %p39
      %p42 = scmp.ne.s32.totalorder %s31, %s41
      %p43 = scmp.eq.s32.totalorder %s24, 0
      %p44 = por %p42, %p43
      %p45 = scmp.lt.s32.totalorder %s19, 2
      // Predicated region
      $region9: #{tpu_custom_call.1} parent=5 // pred_check
        %p46 = pneg %p45
      $region10: #{tpu_custom_call.1} parent=5 // pred_check_branch
        %48 = sbr.rel (%p46) target = $region12
      $region11: #{tpu_custom_call.1} parent=5 // pred_region
        %p49 = pneg %p37
        %p50 = pneg %p34
        %s51 = sand.u32 %s28, 1
        %s52 = scalar_lea.sflag [#allocation7], %s51
        %s53 = sand.u32 %s28, 1
        %s54 = smul.addr %s53, 8
        %s55 = scalar_lea.vmem [#allocation6], %s54
        %p56 = scmp.lt.s32.totalorder %s19, 0
        %s57 = ssub.s32 0, %s19
        %s58 = scalar_select %p56, %s57, %s19
        %s59 = sand.u32 %s58, 1
        %s60 = ssub.s32 0, %s59
        %s61 = scalar_select %p56, %s60, %s59
        %p62 = scmp.ne.s32.totalorder %s61, 0
        %p63 = scmp.lt.s32.totalorder %s61, 0
        %p64 = pnand %p63, %p62
        %p65 = pneg %p64
        %s66 = sadd.s32 %s61, 2
        %s67 = scalar_select %p65, %s66, %s61
        %p68 = scmp.eq.s32.totalorder %s19, 0
        // Predicated region
        $region13: #{tpu_custom_call.1} parent=11 // pred_check
          %p69 = pneg %p68
        $region14: #{tpu_custom_call.1} parent=11 // pred_check_branch
          %71 = sbr.rel (%p69) target = $region16
        $region15: #{tpu_custom_call.1} parent=11 // pred_region
          %s72 = sld [smem:[#allocation5]]
          %p73 = scmp.gt.s32.totalorder %s72, 0
          %s74 = scalar_select %p73, %s72, 0
          %p75 = scmp.lt.s32.totalorder %s74, 63
          %s76 = scalar_select %p75, %s74, 63
          %s77 = scalar_lea.vmem %s1, %s76
          // Predicated region
          $region17: #{tpu_custom_call.1} parent=15 // pred_check
            _
          $region18: #{tpu_custom_call.1} parent=15 // pred_check_branch
            %79 = sbr.rel target = $region20
          $region19: #{tpu_custom_call.1} parent=15 // pred_region
            // Predicated region
            $region32: #{tpu_custom_call.1} parent=19 // pred_check
              _
            $region33: #{tpu_custom_call.1} parent=19 // pred_check_branch
              %95 = sbr.rel (0) target = $region35
            $region34: #{tpu_custom_call.1} parent=19 // pred_region
              %s97 = ssub.s32 2, 1
              loop: start=0, step=1, limit=1
              $region36: #{tpu_custom_call.1} parent=34 // loop_pre_header
                _
              $region37: #{tpu_custom_call.1} parent=34 // loop_header
                %s99 = sphi 0, %s103
                %p100 = scmp.ge.s32.totalorder %s99, 1
                %s104 = sphi %s77, %s77
                %s105 = sphi [#allocation2], [#allocation2]
              $region38: #{tpu_custom_call.1} parent=34 // loop_header_branch
                %102 = sbr.rel (%p100) target = $region42
              $region39: #{tpu_custom_call.1} parent=34 // loop_body
                %v106 = vld [vmem:[%s104] sm:%s97]
                %107 = vst [vmem:[%s105] sm:%s97] %v106
              $region40: #{tpu_custom_call.1} parent=34 // loop_footer
                %s103 = sadd.s32 1, %s99
              $region41: #{tpu_custom_call.1} parent=34 // loop_footer_branch
                %98 = sbr.rel target = $region37
              $region42: #{tpu_custom_call.1} parent=34 // loop_exit
                _
            $region35: #{tpu_custom_call.1} parent=19 // pred_fallthru
              _
          $region20: #{tpu_custom_call.1} parent=15 // pred_fallthru
            _
          // Predicated region
          $region21: #{tpu_custom_call.1} parent=15 // pred_check
            _
          $region22: #{tpu_custom_call.1} parent=15 // pred_check_branch
            %81 = sbr.rel (0) target = $region24
          $region23: #{tpu_custom_call.1} parent=15 // pred_region
            %s83 = ssub.s32 2, 1
            loop: start=0, step=1, limit=1
            $region25: #{tpu_custom_call.1} parent=23 // loop_pre_header
              _
            $region26: #{tpu_custom_call.1} parent=23 // loop_header
              %s85 = sphi 0, %s89
              %p86 = scmp.ge.s32.totalorder %s85, 1
              %s90 = sphi %s77, %s77
              %s91 = sphi [#allocation2], [#allocation2]
            $region27: #{tpu_custom_call.1} parent=23 // loop_header_branch
              %88 = sbr.rel (%p86) target = $region31
            $region28: #{tpu_custom_call.1} parent=23 // loop_body
              %v92 = vld [vmem:[%s90] sm:%s83]
              %93 = vst [vmem:[%s91] sm:%s83] %v92
            $region29: #{tpu_custom_call.1} parent=23 // loop_footer
              %s89 = sadd.s32 1, %s85
            $region30: #{tpu_custom_call.1} parent=23 // loop_footer_branch
              %84 = sbr.rel target = $region26
            $region31: #{tpu_custom_call.1} parent=23 // loop_exit
              _
          $region24: #{tpu_custom_call.1} parent=15 // pred_fallthru
            _
          // Predicated region
          $region43: #{tpu_custom_call.1} parent=15 // pred_check
            _
          $region44: #{tpu_custom_call.1} parent=15 // pred_check_branch
            %110 = sbr.rel (0) target = $region46
          $region45: #{tpu_custom_call.1} parent=15 // pred_region
            %111 = vsyncadd [#allocation3], 16
          $region46: #{tpu_custom_call.1} parent=15 // pred_fallthru
            _
          %s112 = sld [smem:[#allocation5 + $0x1]]
          %p113 = scmp.gt.s32.totalorder %s112, 0
          %s114 = scalar_select %p113, %s112, 0
          %p115 = scmp.lt.s32.totalorder %s114, 63
          %s116 = scalar_select %p115, %s114, 63
          %s117 = scalar_lea.vmem %s1, %s116
          %s118 = scalar_lea.vmem [#allocation2], 1
          %s119 = scalar_lea.sflag [#allocation3], 1
          // Predicated region
          $region47: #{tpu_custom_call.1} parent=15 // pred_check
            _
          $region48: #{tpu_custom_call.1} parent=15 // pred_check_branch
            %121 = sbr.rel target = $region50
          $region49: #{tpu_custom_call.1} parent=15 // pred_region
            // Predicated region
            $region62: #{tpu_custom_call.1} parent=49 // pred_check
              _
            $region63: #{tpu_custom_call.1} parent=49 // pred_check_branch
              %137 = sbr.rel (0) target = $region65
            $region64: #{tpu_custom_call.1} parent=49 // pred_region
              %s139 = ssub.s32 2, 1
              loop: start=0, step=1, limit=1
              $region66: #{tpu_custom_call.1} parent=64 // loop_pre_header
                _
              $region67: #{tpu_custom_call.1} parent=64 // loop_header
                %s141 = sphi 0, %s145
                %p142 = scmp.ge.s32.totalorder %s141, 1
                %s146 = sphi %s117, %s117
                %s147 = sphi %s118, %s118
              $region68: #{tpu_custom_call.1} parent=64 // loop_header_branch
                %144 = sbr.rel (%p142) target = $region72
              $region69: #{tpu_custom_call.1} parent=64 // loop_body
                %v148 = vld [vmem:[%s146] sm:%s139]
                %149 = vst [vmem:[%s147] sm:%s139] %v148
              $region70: #{tpu_custom_call.1} parent=64 // loop_footer
                %s145 = sadd.s32 1, %s141
              $region71: #{tpu_custom_call.1} parent=64 // loop_footer_branch
                %140 = sbr.rel target = $region67
              $region72: #{tpu_custom_call.1} parent=64 // loop_exit
                _
            $region65: #{tpu_custom_call.1} parent=49 // pred_fallthru
              _
          $region50: #{tpu_custom_call.1} parent=15 // pred_fallthru
            _
          // Predicated region
          $region51: #{tpu_custom_call.1} parent=15 // pred_check
            _
          $region52: #{tpu_custom_call.1} parent=15 // pred_check_branch
            %123 = sbr.rel (0) target = $region54
          $region53: #{tpu_custom_call.1} parent=15 // pred_region
            %s125 = ssub.s32 2, 1
            loop: start=0, step=1, limit=1
            $region55: #{tpu_custom_call.1} parent=53 // loop_pre_header
              _
            $region56: #{tpu_custom_call.1} parent=53 // loop_header
              %s127 = sphi 0, %s131
              %p128 = scmp.ge.s32.totalorder %s127, 1
              %s132 = sphi %s117, %s117
              %s133 = sphi %s118, %s118
            $region57: #{tpu_custom_call.1} parent=53 // loop_header_branch
              %130 = sbr.rel (%p128) target = $region61
            $region58: #{tpu_custom_call.1} parent=53 // loop_body
              %v134 = vld [vmem:[%s132] sm:%s125]
              %135 = vst [vmem:[%s133] sm:%s125] %v134
            $region59: #{tpu_custom_call.1} parent=53 // loop_footer
              %s131 = sadd.s32 1, %s127
            $region60: #{tpu_custom_call.1} parent=53 // loop_footer_branch
              %126 = sbr.rel target = $region56
            $region61: #{tpu_custom_call.1} parent=53 // loop_exit
              _
          $region54: #{tpu_custom_call.1} parent=15 // pred_fallthru
            _
          // Predicated region
          $region73: #{tpu_custom_call.1} parent=15 // pred_check
            _
          $region74: #{tpu_custom_call.1} parent=15 // pred_check_branch
            %152 = sbr.rel (0) target = $region76
          $region75: #{tpu_custom_call.1} parent=15 // pred_region
            %153 = vsyncadd %s119, 16
          $region76: #{tpu_custom_call.1} parent=15 // pred_fallthru
            _
          %s154 = sld [smem:[#allocation5 + $0x2]]
          %p155 = scmp.gt.s32.totalorder %s154, 0
          %s156 = scalar_select %p155, %s154, 0
          %p157 = scmp.lt.s32.totalorder %s156, 63
          %s158 = scalar_select %p157, %s156, 63
          %s159 = scalar_lea.vmem %s1, %s158
          %s160 = scalar_lea.vmem [#allocation2], 2
          %s161 = scalar_lea.sflag [#allocation3], 2
          // Predicated region
          $region77: #{tpu_custom_call.1} parent=15 // pred_check
            _
          $region78: #{tpu_custom_call.1} parent=15 // pred_check_branch
            %163 = sbr.rel target = $region80
          $region79: #{tpu_custom_call.1} parent=15 // pred_region
            // Predicated region
            $region92: #{tpu_custom_call.1} parent=79 // pred_check
              _
            $region93: #{tpu_custom_call.1} parent=79 // pred_check_branch
              %179 = sbr.rel (0) target = $region95
            $region94: #{tpu_custom_call.1} parent=79 // pred_region
              %s181 = ssub.s32 2, 1
              loop: start=0, step=1, limit=1
              $region96: #{tpu_custom_call.1} parent=94 // loop_pre_header
                _
              $region97: #{tpu_custom_call.1} parent=94 // loop_header
                %s183 = sphi 0, %s187
                %p184 = scmp.ge.s32.totalorder %s183, 1
                %s188 = sphi %s159, %s159
                %s189 = sphi %s160, %s160
              $region98: #{tpu_custom_call.1} parent=94 // loop_header_branch
                %186 = sbr.rel (%p184) target = $region102
              $region99: #{tpu_custom_call.1} parent=94 // loop_body
                %v190 = vld [vmem:[%s188] sm:%s181]
                %191 = vst [vmem:[%s189] sm:%s181] %v190
              $region100: #{tpu_custom_call.1} parent=94 // loop_footer
                %s187 = sadd.s32 1, %s183
              $region101: #{tpu_custom_call.1} parent=94 // loop_footer_branch
                %182 = sbr.rel target = $region97
              $region102: #{tpu_custom_call.1} parent=94 // loop_exit
                _
            $region95: #{tpu_custom_call.1} parent=79 // pred_fallthru
              _
          $region80: #{tpu_custom_call.1} parent=15 // pred_fallthru
            _
          // Predicated region
          $region81: #{tpu_custom_call.1} parent=15 // pred_check
            _
          $region82: #{tpu_custom_call.1} parent=15 // pred_check_branch
            %165 = sbr.rel (0) target = $region84
          $region83: #{tpu_custom_call.1} parent=15 // pred_region
            %s167 = ssub.s32 2, 1
            loop: start=0, step=1, limit=1
            $region85: #{tpu_custom_call.1} parent=83 // loop_pre_header
              _
            $region86: #{tpu_custom_call.1} parent=83 // loop_header
              %s169 = sphi 0, %s173
              %p170 = scmp.ge.s32.totalorder %s169, 1
              %s174 = sphi %s159, %s159
              %s175 = sphi %s160, %s160
            $region87: #{tpu_custom_call.1} parent=83 // loop_header_branch
              %172 = sbr.rel (%p170) target = $region91
            $region88: #{tpu_custom_call.1} parent=83 // loop_body
              %v176 = vld [vmem:[%s174] sm:%s167]
              %177 = vst [vmem:[%s175] sm:%s167] %v176
            $region89: #{tpu_custom_call.1} parent=83 // loop_footer
              %s173 = sadd.s32 1, %s169
            $region90: #{tpu_custom_call.1} parent=83 // loop_footer_branch
              %168 = sbr.rel target = $region86
            $region91: #{tpu_custom_call.1} parent=83 // loop_exit
              _
          $region84: #{tpu_custom_call.1} parent=15 // pred_fallthru
            _
          // Predicated region
          $region103: #{tpu_custom_call.1} parent=15 // pred_check
            _
          $region104: #{tpu_custom_call.1} parent=15 // pred_check_branch
            %194 = sbr.rel (0) target = $region106
          $region105: #{tpu_custom_call.1} parent=15 // pred_region
            %195 = vsyncadd %s161, 16
          $region106: #{tpu_custom_call.1} parent=15 // pred_fallthru
            _
          %s196 = sld [smem:[#allocation5 + $0x3]]
          %p197 = scmp.gt.s32.totalorder %s196, 0
          %s198 = scalar_select %p197, %s196, 0
          %p199 = scmp.lt.s32.totalorder %s198, 63
          %s200 = scalar_select %p199, %s198, 63
          %s201 = scalar_lea.vmem %s1, %s200
          %s202 = scalar_lea.vmem [#allocation2], 3
          %s203 = scalar_lea.sflag [#allocation3], 3
          // Predicated region
          $region107: #{tpu_custom_call.1} parent=15 // pred_check
            _
          $region108: #{tpu_custom_call.1} parent=15 // pred_check_branch
            %205 = sbr.rel target = $region110
          $region109: #{tpu_custom_call.1} parent=15 // pred_region
            // Predicated region
            $region122: #{tpu_custom_call.1} parent=109 // pred_check
              _
            $region123: #{tpu_custom_call.1} parent=109 // pred_check_branch
              %221 = sbr.rel (0) target = $region125
            $region124: #{tpu_custom_call.1} parent=109 // pred_region
              %s223 = ssub.s32 2, 1
              loop: start=0, step=1, limit=1
              $region126: #{tpu_custom_call.1} parent=124 // loop_pre_header
                _
              $region127: #{tpu_custom_call.1} parent=124 // loop_header
                %s225 = sphi 0, %s229
                %p226 = scmp.ge.s32.totalorder %s225, 1
                %s230 = sphi %s201, %s201
                %s231 = sphi %s202, %s202
              $region128: #{tpu_custom_call.1} parent=124 // loop_header_branch
                %228 = sbr.rel (%p226) target = $region132
              $region129: #{tpu_custom_call.1} parent=124 // loop_body
                %v232 = vld [vmem:[%s230] sm:%s223]
                %233 = vst [vmem:[%s231] sm:%s223] %v232
              $region130: #{tpu_custom_call.1} parent=124 // loop_footer
                %s229 = sadd.s32 1, %s225
              $region131: #{tpu_custom_call.1} parent=124 // loop_footer_branch
                %224 = sbr.rel target = $region127
              $region132: #{tpu_custom_call.1} parent=124 // loop_exit
                _
            $region125: #{tpu_custom_call.1} parent=109 // pred_fallthru
              _
          $region110: #{tpu_custom_call.1} parent=15 // pred_fallthru
            _
          // Predicated region
          $region111: #{tpu_custom_call.1} parent=15 // pred_check
            _
          $region112: #{tpu_custom_call.1} parent=15 // pred_check_branch
            %207 = sbr.rel (0) target = $region114
          $region113: #{tpu_custom_call.1} parent=15 // pred_region
            %s209 = ssub.s32 2, 1
            loop: start=0, step=1, limit=1
            $region115: #{tpu_custom_call.1} parent=113 // loop_pre_header
              _
            $region116: #{tpu_custom_call.1} parent=113 // loop_header
              %s211 = sphi 0, %s215
              %p212 = scmp.ge.s32.totalorder %s211, 1
              %s216 = sphi %s201, %s201
              %s217 = sphi %s202, %s202
            $region117: #{tpu_custom_call.1} parent=113 // loop_header_branch
              %214 = sbr.rel (%p212) target = $region121
            $region118: #{tpu_custom_call.1} parent=113 // loop_body
              %v218 = vld [vmem:[%s216] sm:%s209]
              %219 = vst [vmem:[%s217] sm:%s209] %v218
            $region119: #{tpu_custom_call.1} parent=113 // loop_footer
              %s215 = sadd.s32 1, %s211
            $region120: #{tpu_custom_call.1} parent=113 // loop_footer_branch
              %210 = sbr.rel target = $region116
            $region121: #{tpu_custom_call.1} parent=113 // loop_exit
              _
          $region114: #{tpu_custom_call.1} parent=15 // pred_fallthru
            _
          // Predicated region
          $region133: #{tpu_custom_call.1} parent=15 // pred_check
            _
          $region134: #{tpu_custom_call.1} parent=15 // pred_check_branch
            %236 = sbr.rel (0) target = $region136
          $region135: #{tpu_custom_call.1} parent=15 // pred_region
            %237 = vsyncadd %s203, 16
          $region136: #{tpu_custom_call.1} parent=15 // pred_fallthru
            _
          %s238 = sld [smem:[#allocation5 + $0x4]]
          %p239 = scmp.gt.s32.totalorder %s238, 0
          %s240 = scalar_select %p239, %s238, 0
          %p241 = scmp.lt.s32.totalorder %s240, 63
          %s242 = scalar_select %p241, %s240, 63
          %s243 = scalar_lea.vmem %s1, %s242
          %s244 = scalar_lea.vmem [#allocation2], 4
          %s245 = scalar_lea.sflag [#allocation3], 4
          // Predicated region
          $region137: #{tpu_custom_call.1} parent=15 // pred_check
            _
          $region138: #{tpu_custom_call.1} parent=15 // pred_check_branch
            %247 = sbr.rel target = $region140
          $region139: #{tpu_custom_call.1} parent=15 // pred_region
            // Predicated region
            $region152: #{tpu_custom_call.1} parent=139 // pred_check
              _
            $region153: #{tpu_custom_call.1} parent=139 // pred_check_branch
              %263 = sbr.rel (0) target = $region155
            $region154: #{tpu_custom_call.1} parent=139 // pred_region
              %s265 = ssub.s32 2, 1
              loop: start=0, step=1, limit=1
              $region156: #{tpu_custom_call.1} parent=154 // loop_pre_header
                _
              $region157: #{tpu_custom_call.1} parent=154 // loop_header
                %s267 = sphi 0, %s271
                %p268 = scmp.ge.s32.totalorder %s267, 1
                %s272 = sphi %s243, %s243
                %s273 = sphi %s244, %s244
              $region158: #{tpu_custom_call.1} parent=154 // loop_header_branch
                %270 = sbr.rel (%p268) target = $region162
              $region159: #{tpu_custom_call.1} parent=154 // loop_body
                %v274 = vld [vmem:[%s272] sm:%s265]
                %275 = vst [vmem:[%s273] sm:%s265] %v274
              $region160: #{tpu_custom_call.1} parent=154 // loop_footer
                %s271 = sadd.s32 1, %s267
              $region161: #{tpu_custom_call.1} parent=154 // loop_footer_branch
                %266 = sbr.rel target = $region157
              $region162: #{tpu_custom_call.1} parent=154 // loop_exit
                _
            $region155: #{tpu_custom_call.1} parent=139 // pred_fallthru
              _
          $region140: #{tpu_custom_call.1} parent=15 // pred_fallthru
            _
          // Predicated region
          $region141: #{tpu_custom_call.1} parent=15 // pred_check
            _
          $region142: #{tpu_custom_call.1} parent=15 // pred_check_branch
            %249 = sbr.rel (0) target = $region144
          $region143: #{tpu_custom_call.1} parent=15 // pred_region
            %s251 = ssub.s32 2, 1
            loop: start=0, step=1, limit=1
            $region145: #{tpu_custom_call.1} parent=143 // loop_pre_header
              _
            $region146: #{tpu_custom_call.1} parent=143 // loop_header
              %s253 = sphi 0, %s257
              %p254 = scmp.ge.s32.totalorder %s253, 1
              %s258 = sphi %s243, %s243
              %s259 = sphi %s244, %s244
            $region147: #{tpu_custom_call.1} parent=143 // loop_header_branch
              %256 = sbr.rel (%p254) target = $region151
            $region148: #{tpu_custom_call.1} parent=143 // loop_body
              %v260 = vld [vmem:[%s258] sm:%s251]
              %261 = vst [vmem:[%s259] sm:%s251] %v260
            $region149: #{tpu_custom_call.1} parent=143 // loop_footer
              %s257 = sadd.s32 1, %s253
            $region150: #{tpu_custom_call.1} parent=143 // loop_footer_branch
              %252 = sbr.rel target = $region146
            $region151: #{tpu_custom_call.1} parent=143 // loop_exit
              _
          $region144: #{tpu_custom_call.1} parent=15 // pred_fallthru
            _
          // Predicated region
          $region163: #{tpu_custom_call.1} parent=15 // pred_check
            _
          $region164: #{tpu_custom_call.1} parent=15 // pred_check_branch
            %278 = sbr.rel (0) target = $region166
          $region165: #{tpu_custom_call.1} parent=15 // pred_region
            %279 = vsyncadd %s245, 16
          $region166: #{tpu_custom_call.1} parent=15 // pred_fallthru
            _
          %s280 = sld [smem:[#allocation5 + $0x5]]
          %p281 = scmp.gt.s32.totalorder %s280, 0
          %s282 = scalar_select %p281, %s280, 0
          %p283 = scmp.lt.s32.totalorder %s282, 63
          %s284 = scalar_select %p283, %s282, 63
          %s285 = scalar_lea.vmem %s1, %s284
          %s286 = scalar_lea.vmem [#allocation2], 5
          %s287 = scalar_lea.sflag [#allocation3], 5
          // Predicated region
          $region167: #{tpu_custom_call.1} parent=15 // pred_check
            _
          $region168: #{tpu_custom_call.1} parent=15 // pred_check_branch
            %289 = sbr.rel target = $region170
          $region169: #{tpu_custom_call.1} parent=15 // pred_region
            // Predicated region
            $region182: #{tpu_custom_call.1} parent=169 // pred_check
              _
            $region183: #{tpu_custom_call.1} parent=169 // pred_check_branch
              %305 = sbr.rel (0) target = $region185
            $region184: #{tpu_custom_call.1} parent=169 // pred_region
              %s307 = ssub.s32 2, 1
              loop: start=0, step=1, limit=1
              $region186: #{tpu_custom_call.1} parent=184 // loop_pre_header
                _
              $region187: #{tpu_custom_call.1} parent=184 // loop_header
                %s309 = sphi 0, %s313
                %p310 = scmp.ge.s32.totalorder %s309, 1
                %s314 = sphi %s285, %s285
                %s315 = sphi %s286, %s286
              $region188: #{tpu_custom_call.1} parent=184 // loop_header_branch
                %312 = sbr.rel (%p310) target = $region192
              $region189: #{tpu_custom_call.1} parent=184 // loop_body
                %v316 = vld [vmem:[%s314] sm:%s307]
                %317 = vst [vmem:[%s315] sm:%s307] %v316
              $region190: #{tpu_custom_call.1} parent=184 // loop_footer
                %s313 = sadd.s32 1, %s309
              $region191: #{tpu_custom_call.1} parent=184 // loop_footer_branch
                %308 = sbr.rel target = $region187
              $region192: #{tpu_custom_call.1} parent=184 // loop_exit
                _
            $region185: #{tpu_custom_call.1} parent=169 // pred_fallthru
              _
          $region170: #{tpu_custom_call.1} parent=15 // pred_fallthru
            _
          // Predicated region
          $region171: #{tpu_custom_call.1} parent=15 // pred_check
            _
          $region172: #{tpu_custom_call.1} parent=15 // pred_check_branch
            %291 = sbr.rel (0) target = $region174
          $region173: #{tpu_custom_call.1} parent=15 // pred_region
            %s293 = ssub.s32 2, 1
            loop: start=0, step=1, limit=1
            $region175: #{tpu_custom_call.1} parent=173 // loop_pre_header
              _
            $region176: #{tpu_custom_call.1} parent=173 // loop_header
              %s295 = sphi 0, %s299
              %p296 = scmp.ge.s32.totalorder %s295, 1
              %s300 = sphi %s285, %s285
              %s301 = sphi %s286, %s286
            $region177: #{tpu_custom_call.1} parent=173 // loop_header_branch
              %298 = sbr.rel (%p296) target = $region181
            $region178: #{tpu_custom_call.1} parent=173 // loop_body
              %v302 = vld [vmem:[%s300] sm:%s293]
              %303 = vst [vmem:[%s301] sm:%s293] %v302
            $region179: #{tpu_custom_call.1} parent=173 // loop_footer
              %s299 = sadd.s32 1, %s295
            $region180: #{tpu_custom_call.1} parent=173 // loop_footer_branch
              %294 = sbr.rel target = $region176
            $region181: #{tpu_custom_call.1} parent=173 // loop_exit
              _
          $region174: #{tpu_custom_call.1} parent=15 // pred_fallthru
            _
          // Predicated region
          $region193: #{tpu_custom_call.1} parent=15 // pred_check
            _
          $region194: #{tpu_custom_call.1} parent=15 // pred_check_branch
            %320 = sbr.rel (0) target = $region196
          $region195: #{tpu_custom_call.1} parent=15 // pred_region
            %321 = vsyncadd %s287, 16
          $region196: #{tpu_custom_call.1} parent=15 // pred_fallthru
            _
          %s322 = sld [smem:[#allocation5 + $0x6]]
          %p323 = scmp.gt.s32.totalorder %s322, 0
          %s324 = scalar_select %p323, %s322, 0
          %p325 = scmp.lt.s32.totalorder %s324, 63
          %s326 = scalar_select %p325, %s324, 63
          %s327 = scalar_lea.vmem %s1, %s326
          %s328 = scalar_lea.vmem [#allocation2], 6
          %s329 = scalar_lea.sflag [#allocation3], 6
          // Predicated region
          $region197: #{tpu_custom_call.1} parent=15 // pred_check
            _
          $region198: #{tpu_custom_call.1} parent=15 // pred_check_branch
            %331 = sbr.rel target = $region200
          $region199: #{tpu_custom_call.1} parent=15 // pred_region
            // Predicated region
            $region212: #{tpu_custom_call.1} parent=199 // pred_check
              _
            $region213: #{tpu_custom_call.1} parent=199 // pred_check_branch
              %347 = sbr.rel (0) target = $region215
            $region214: #{tpu_custom_call.1} parent=199 // pred_region
              %s349 = ssub.s32 2, 1
              loop: start=0, step=1, limit=1
              $region216: #{tpu_custom_call.1} parent=214 // loop_pre_header
                _
              $region217: #{tpu_custom_call.1} parent=214 // loop_header
                %s351 = sphi 0, %s355
                %p352 = scmp.ge.s32.totalorder %s351, 1
                %s356 = sphi %s327, %s327
                %s357 = sphi %s328, %s328
              $region218: #{tpu_custom_call.1} parent=214 // loop_header_branch
                %354 = sbr.rel (%p352) target = $region222
              $region219: #{tpu_custom_call.1} parent=214 // loop_body
                %v358 = vld [vmem:[%s356] sm:%s349]
                %359 = vst [vmem:[%s357] sm:%s349] %v358
              $region220: #{tpu_custom_call.1} parent=214 // loop_footer
                %s355 = sadd.s32 1, %s351
              $region221: #{tpu_custom_call.1} parent=214 // loop_footer_branch
                %350 = sbr.rel target = $region217
              $region222: #{tpu_custom_call.1} parent=214 // loop_exit
                _
            $region215: #{tpu_custom_call.1} parent=199 // pred_fallthru
              _
          $region200: #{tpu_custom_call.1} parent=15 // pred_fallthru
            _
          // Predicated region
          $region201: #{tpu_custom_call.1} parent=15 // pred_check
            _
          $region202: #{tpu_custom_call.1} parent=15 // pred_check_branch
            %333 = sbr.rel (0) target = $region204
          $region203: #{tpu_custom_call.1} parent=15 // pred_region
            %s335 = ssub.s32 2, 1
            loop: start=0, step=1, limit=1
            $region205: #{tpu_custom_call.1} parent=203 // loop_pre_header
              _
            $region206: #{tpu_custom_call.1} parent=203 // loop_header
              %s337 = sphi 0, %s341
              %p338 = scmp.ge.s32.totalorder %s337, 1
              %s342 = sphi %s327, %s327
              %s343 = sphi %s328, %s328
            $region207: #{tpu_custom_call.1} parent=203 // loop_header_branch
              %340 = sbr.rel (%p338) target = $region211
            $region208: #{tpu_custom_call.1} parent=203 // loop_body
              %v344 = vld [vmem:[%s342] sm:%s335]
              %345 = vst [vmem:[%s343] sm:%s335] %v344
            $region209: #{tpu_custom_call.1} parent=203 // loop_footer
              %s341 = sadd.s32 1, %s337
            $region210: #{tpu_custom_call.1} parent=203 // loop_footer_branch
              %336 = sbr.rel target = $region206
            $region211: #{tpu_custom_call.1} parent=203 // loop_exit
              _
          $region204: #{tpu_custom_call.1} parent=15 // pred_fallthru
            _
          // Predicated region
          $region223: #{tpu_custom_call.1} parent=15 // pred_check
            _
          $region224: #{tpu_custom_call.1} parent=15 // pred_check_branch
            %362 = sbr.rel (0) target = $region226
          $region225: #{tpu_custom_call.1} parent=15 // pred_region
            %363 = vsyncadd %s329, 16
          $region226: #{tpu_custom_call.1} parent=15 // pred_fallthru
            _
          %s364 = sld [smem:[#allocation5 + $0x7]]
          %p365 = scmp.gt.s32.totalorder %s364, 0
          %s366 = scalar_select %p365, %s364, 0
          %p367 = scmp.lt.s32.totalorder %s366, 63
          %s368 = scalar_select %p367, %s366, 63
          %s369 = scalar_lea.vmem %s1, %s368
          %s370 = scalar_lea.vmem [#allocation2], 7
          %s371 = scalar_lea.sflag [#allocation3], 7
          // Predicated region
          $region227: #{tpu_custom_call.1} parent=15 // pred_check
            _
          $region228: #{tpu_custom_call.1} parent=15 // pred_check_branch
            %373 = sbr.rel target = $region230
          $region229: #{tpu_custom_call.1} parent=15 // pred_region
            // Predicated region
            $region242: #{tpu_custom_call.1} parent=229 // pred_check
              _
            $region243: #{tpu_custom_call.1} parent=229 // pred_check_branch
              %389 = sbr.rel (0) target = $region245
            $region244: #{tpu_custom_call.1} parent=229 // pred_region
              %s391 = ssub.s32 2, 1
              loop: start=0, step=1, limit=1
              $region246: #{tpu_custom_call.1} parent=244 // loop_pre_header
                _
              $region247: #{tpu_custom_call.1} parent=244 // loop_header
                %s393 = sphi 0, %s397
                %p394 = scmp.ge.s32.totalorder %s393, 1
                %s398 = sphi %s369, %s369
                %s399 = sphi %s370, %s370
              $region248: #{tpu_custom_call.1} parent=244 // loop_header_branch
                %396 = sbr.rel (%p394) target = $region252
              $region249: #{tpu_custom_call.1} parent=244 // loop_body
                %v400 = vld [vmem:[%s398] sm:%s391]
                %401 = vst [vmem:[%s399] sm:%s391] %v400
              $region250: #{tpu_custom_call.1} parent=244 // loop_footer
                %s397 = sadd.s32 1, %s393
              $region251: #{tpu_custom_call.1} parent=244 // loop_footer_branch
                %392 = sbr.rel target = $region247
              $region252: #{tpu_custom_call.1} parent=244 // loop_exit
                _
            $region245: #{tpu_custom_call.1} parent=229 // pred_fallthru
              _
          $region230: #{tpu_custom_call.1} parent=15 // pred_fallthru
            _
          // Predicated region
          $region231: #{tpu_custom_call.1} parent=15 // pred_check
            _
          $region232: #{tpu_custom_call.1} parent=15 // pred_check_branch
            %375 = sbr.rel (0) target = $region234
          $region233: #{tpu_custom_call.1} parent=15 // pred_region
            %s377 = ssub.s32 2, 1
            loop: start=0, step=1, limit=1
            $region235: #{tpu_custom_call.1} parent=233 // loop_pre_header
              _
            $region236: #{tpu_custom_call.1} parent=233 // loop_header
              %s379 = sphi 0, %s383
              %p380 = scmp.ge.s32.totalorder %s379, 1
              %s384 = sphi %s369, %s369
              %s385 = sphi %s370, %s370
            $region237: #{tpu_custom_call.1} parent=233 // loop_header_branch
              %382 = sbr.rel (%p380) target = $region241
            $region238: #{tpu_custom_call.1} parent=233 // loop_body
              %v386 = vld [vmem:[%s384] sm:%s377]
              %387 = vst [vmem:[%s385] sm:%s377] %v386
            $region239: #{tpu_custom_call.1} parent=233 // loop_footer
              %s383 = sadd.s32 1, %s379
            $region240: #{tpu_custom_call.1} parent=233 // loop_footer_branch
              %378 = sbr.rel target = $region236
            $region241: #{tpu_custom_call.1} parent=233 // loop_exit
              _
          $region234: #{tpu_custom_call.1} parent=15 // pred_fallthru
            _
          // Predicated region
          $region253: #{tpu_custom_call.1} parent=15 // pred_check
            _
          $region254: #{tpu_custom_call.1} parent=15 // pred_check_branch
            %404 = sbr.rel (0) target = $region256
          $region255: #{tpu_custom_call.1} parent=15 // pred_region
            %405 = vsyncadd %s371, 16
          $region256: #{tpu_custom_call.1} parent=15 // pred_fallthru
            _
        $region16: #{tpu_custom_call.1} parent=11 // pred_fallthru
          _
        %s406 = sadd.s32 %s19, 1
        %p407 = scmp.lt.s32.totalorder %s406, 2
        // Predicated region
        $region257: #{tpu_custom_call.1} parent=11 // pred_check
          %p408 = pneg %p407
        $region258: #{tpu_custom_call.1} parent=11 // pred_check_branch
          %410 = sbr.rel (%p408) target = $region260
        $region259: #{tpu_custom_call.1} parent=11 // pred_region
          %s411 = ssub.s32 1, %s67
          %s412 = smul.u32 %s406, 8
          %s413 = sld [smem:[#allocation5 + %s412]]
          %p414 = scmp.gt.s32.totalorder %s413, 0
          %s415 = scalar_select %p414, %s413, 0
          %p416 = scmp.lt.s32.totalorder %s415, 63
          %s417 = scalar_select %p416, %s415, 63
          %s418 = smul.u32 %s411, 8
          %s419 = scalar_lea.vmem %s1, %s417
          %s420 = scalar_lea.vmem [#allocation2], %s418
          %s421 = scalar_lea.sflag [#allocation3], %s418
          // Predicated region
          $region261: #{tpu_custom_call.1} parent=259 // pred_check
            _
          $region262: #{tpu_custom_call.1} parent=259 // pred_check_branch
            %423 = sbr.rel target = $region264
          $region263: #{tpu_custom_call.1} parent=259 // pred_region
            // Predicated region
            $region276: #{tpu_custom_call.1} parent=263 // pred_check
              _
            $region277: #{tpu_custom_call.1} parent=263 // pred_check_branch
              %439 = sbr.rel (0) target = $region279
            $region278: #{tpu_custom_call.1} parent=263 // pred_region
              %s441 = ssub.s32 2, 1
              loop: start=0, step=1, limit=1
              $region280: #{tpu_custom_call.1} parent=278 // loop_pre_header
                _
              $region281: #{tpu_custom_call.1} parent=278 // loop_header
                %s443 = sphi 0, %s447
                %p444 = scmp.ge.s32.totalorder %s443, 1
                %s448 = sphi %s419, %s419
                %s449 = sphi %s420, %s420
              $region282: #{tpu_custom_call.1} parent=278 // loop_header_branch
                %446 = sbr.rel (%p444) target = $region286
              $region283: #{tpu_custom_call.1} parent=278 // loop_body
                %v450 = vld [vmem:[%s448] sm:%s441]
                %451 = vst [vmem:[%s449] sm:%s441] %v450
              $region284: #{tpu_custom_call.1} parent=278 // loop_footer
                %s447 = sadd.s32 1, %s443
              $region285: #{tpu_custom_call.1} parent=278 // loop_footer_branch
                %442 = sbr.rel target = $region281
              $region286: #{tpu_custom_call.1} parent=278 // loop_exit
                _
            $region279: #{tpu_custom_call.1} parent=263 // pred_fallthru
              _
          $region264: #{tpu_custom_call.1} parent=259 // pred_fallthru
            _
          // Predicated region
          $region265: #{tpu_custom_call.1} parent=259 // pred_check
            _
          $region266: #{tpu_custom_call.1} parent=259 // pred_check_branch
            %425 = sbr.rel (0) target = $region268
          $region267: #{tpu_custom_call.1} parent=259 // pred_region
            %s427 = ssub.s32 2, 1
            loop: start=0, step=1, limit=1
            $region269: #{tpu_custom_call.1} parent=267 // loop_pre_header
              _
            $region270: #{tpu_custom_call.1} parent=267 // loop_header
              %s429 = sphi 0, %s433
              %p430 = scmp.ge.s32.totalorder %s429, 1
              %s434 = sphi %s419, %s419
              %s435 = sphi %s420, %s420
            $region271: #{tpu_custom_call.1} parent=267 // loop_header_branch
              %432 = sbr.rel (%p430) target = $region275
            $region272: #{tpu_custom_call.1} parent=267 // loop_body
              %v436 = vld [vmem:[%s434] sm:%s427]
              %437 = vst [vmem:[%s435] sm:%s427] %v436
            $region273: #{tpu_custom_call.1} parent=267 // loop_footer
              %s433 = sadd.s32 1, %s429
            $region274: #{tpu_custom_call.1} parent=267 // loop_footer_branch
              %428 = sbr.rel target = $region270
            $region275: #{tpu_custom_call.1} parent=267 // loop_exit
              _
          $region268: #{tpu_custom_call.1} parent=259 // pred_fallthru
            _
          // Predicated region
          $region287: #{tpu_custom_call.1} parent=259 // pred_check
            _
          $region288: #{tpu_custom_call.1} parent=259 // pred_check_branch
            %454 = sbr.rel (0) target = $region290
          $region289: #{tpu_custom_call.1} parent=259 // pred_region
            %455 = vsyncadd %s421, 16
          $region290: #{tpu_custom_call.1} parent=259 // pred_fallthru
            _
          %s456 = sadd.s32 %s412, 1
          %s457 = sld [smem:[#allocation5 + %s456]]
          %p458 = scmp.gt.s32.totalorder %s457, 0
          %s459 = scalar_select %p458, %s457, 0
          %p460 = scmp.lt.s32.totalorder %s459, 63
          %s461 = scalar_select %p460, %s459, 63
          %s462 = sadd.s32 %s418, 1
          %s463 = scalar_lea.vmem %s1, %s461
          %s464 = scalar_lea.vmem [#allocation2], %s462
          %s465 = scalar_lea.sflag [#allocation3], %s462
          // Predicated region
          $region291: #{tpu_custom_call.1} parent=259 // pred_check
            _
          $region292: #{tpu_custom_call.1} parent=259 // pred_check_branch
            %467 = sbr.rel target = $region294
          $region293: #{tpu_custom_call.1} parent=259 // pred_region
            // Predicated region
            $region306: #{tpu_custom_call.1} parent=293 // pred_check
              _
            $region307: #{tpu_custom_call.1} parent=293 // pred_check_branch
              %483 = sbr.rel (0) target = $region309
            $region308: #{tpu_custom_call.1} parent=293 // pred_region
              %s485 = ssub.s32 2, 1
              loop: start=0, step=1, limit=1
              $region310: #{tpu_custom_call.1} parent=308 // loop_pre_header
                _
              $region311: #{tpu_custom_call.1} parent=308 // loop_header
                %s487 = sphi 0, %s491
                %p488 = scmp.ge.s32.totalorder %s487, 1
                %s492 = sphi %s463, %s463
                %s493 = sphi %s464, %s464
              $region312: #{tpu_custom_call.1} parent=308 // loop_header_branch
                %490 = sbr.rel (%p488) target = $region316
              $region313: #{tpu_custom_call.1} parent=308 // loop_body
                %v494 = vld [vmem:[%s492] sm:%s485]
                %495 = vst [vmem:[%s493] sm:%s485] %v494
              $region314: #{tpu_custom_call.1} parent=308 // loop_footer
                %s491 = sadd.s32 1, %s487
              $region315: #{tpu_custom_call.1} parent=308 // loop_footer_branch
                %486 = sbr.rel target = $region311
              $region316: #{tpu_custom_call.1} parent=308 // loop_exit
                _
            $region309: #{tpu_custom_call.1} parent=293 // pred_fallthru
              _
          $region294: #{tpu_custom_call.1} parent=259 // pred_fallthru
            _
          // Predicated region
          $region295: #{tpu_custom_call.1} parent=259 // pred_check
            _
          $region296: #{tpu_custom_call.1} parent=259 // pred_check_branch
            %469 = sbr.rel (0) target = $region298
          $region297: #{tpu_custom_call.1} parent=259 // pred_region
            %s471 = ssub.s32 2, 1
            loop: start=0, step=1, limit=1
            $region299: #{tpu_custom_call.1} parent=297 // loop_pre_header
              _
            $region300: #{tpu_custom_call.1} parent=297 // loop_header
              %s473 = sphi 0, %s477
              %p474 = scmp.ge.s32.totalorder %s473, 1
              %s478 = sphi %s463, %s463
              %s479 = sphi %s464, %s464
            $region301: #{tpu_custom_call.1} parent=297 // loop_header_branch
              %476 = sbr.rel (%p474) target = $region305
            $region302: #{tpu_custom_call.1} parent=297 // loop_body
              %v480 = vld [vmem:[%s478] sm:%s471]
              %481 = vst [vmem:[%s479] sm:%s471] %v480
            $region303: #{tpu_custom_call.1} parent=297 // loop_footer
              %s477 = sadd.s32 1, %s473
            $region304: #{tpu_custom_call.1} parent=297 // loop_footer_branch
              %472 = sbr.rel target = $region300
            $region305: #{tpu_custom_call.1} parent=297 // loop_exit
              _
          $region298: #{tpu_custom_call.1} parent=259 // pred_fallthru
            _
          // Predicated region
          $region317: #{tpu_custom_call.1} parent=259 // pred_check
            _
          $region318: #{tpu_custom_call.1} parent=259 // pred_check_branch
            %498 = sbr.rel (0) target = $region320
          $region319: #{tpu_custom_call.1} parent=259 // pred_region
            %499 = vsyncadd %s465, 16
          $region320: #{tpu_custom_call.1} parent=259 // pred_fallthru
            _
          %s500 = sadd.s32 %s412, 2
          %s501 = sld [smem:[#allocation5 + %s500]]
          %p502 = scmp.gt.s32.totalorder %s501, 0
          %s503 = scalar_select %p502, %s501, 0
          %p504 = scmp.lt.s32.totalorder %s503, 63
          %s505 = scalar_select %p504, %s503, 63
          %s506 = sadd.s32 %s418, 2
          %s507 = scalar_lea.vmem %s1, %s505
          %s508 = scalar_lea.vmem [#allocation2], %s506
          %s509 = scalar_lea.sflag [#allocation3], %s506
          // Predicated region
          $region321: #{tpu_custom_call.1} parent=259 // pred_check
            _
          $region322: #{tpu_custom_call.1} parent=259 // pred_check_branch
            %511 = sbr.rel target = $region324
          $region323: #{tpu_custom_call.1} parent=259 // pred_region
            // Predicated region
            $region336: #{tpu_custom_call.1} parent=323 // pred_check
              _
            $region337: #{tpu_custom_call.1} parent=323 // pred_check_branch
              %527 = sbr.rel (0) target = $region339
            $region338: #{tpu_custom_call.1} parent=323 // pred_region
              %s529 = ssub.s32 2, 1
              loop: start=0, step=1, limit=1
              $region340: #{tpu_custom_call.1} parent=338 // loop_pre_header
                _
              $region341: #{tpu_custom_call.1} parent=338 // loop_header
                %s531 = sphi 0, %s535
                %p532 = scmp.ge.s32.totalorder %s531, 1
                %s536 = sphi %s507, %s507
                %s537 = sphi %s508, %s508
              $region342: #{tpu_custom_call.1} parent=338 // loop_header_branch
                %534 = sbr.rel (%p532) target = $region346
              $region343: #{tpu_custom_call.1} parent=338 // loop_body
                %v538 = vld [vmem:[%s536] sm:%s529]
                %539 = vst [vmem:[%s537] sm:%s529] %v538
              $region344: #{tpu_custom_call.1} parent=338 // loop_footer
                %s535 = sadd.s32 1, %s531
              $region345: #{tpu_custom_call.1} parent=338 // loop_footer_branch
                %530 = sbr.rel target = $region341
              $region346: #{tpu_custom_call.1} parent=338 // loop_exit
                _
            $region339: #{tpu_custom_call.1} parent=323 // pred_fallthru
              _
          $region324: #{tpu_custom_call.1} parent=259 // pred_fallthru
            _
          // Predicated region
          $region325: #{tpu_custom_call.1} parent=259 // pred_check
            _
          $region326: #{tpu_custom_call.1} parent=259 // pred_check_branch
            %513 = sbr.rel (0) target = $region328
          $region327: #{tpu_custom_call.1} parent=259 // pred_region
            %s515 = ssub.s32 2, 1
            loop: start=0, step=1, limit=1
            $region329: #{tpu_custom_call.1} parent=327 // loop_pre_header
              _
            $region330: #{tpu_custom_call.1} parent=327 // loop_header
              %s517 = sphi 0, %s521
              %p518 = scmp.ge.s32.totalorder %s517, 1
              %s522 = sphi %s507, %s507
              %s523 = sphi %s508, %s508
            $region331: #{tpu_custom_call.1} parent=327 // loop_header_branch
              %520 = sbr.rel (%p518) target = $region335
            $region332: #{tpu_custom_call.1} parent=327 // loop_body
              %v524 = vld [vmem:[%s522] sm:%s515]
              %525 = vst [vmem:[%s523] sm:%s515] %v524
            $region333: #{tpu_custom_call.1} parent=327 // loop_footer
              %s521 = sadd.s32 1, %s517
            $region334: #{tpu_custom_call.1} parent=327 // loop_footer_branch
              %516 = sbr.rel target = $region330
            $region335: #{tpu_custom_call.1} parent=327 // loop_exit
              _
          $region328: #{tpu_custom_call.1} parent=259 // pred_fallthru
            _
          // Predicated region
          $region347: #{tpu_custom_call.1} parent=259 // pred_check
            _
          $region348: #{tpu_custom_call.1} parent=259 // pred_check_branch
            %542 = sbr.rel (0) target = $region350
          $region349: #{tpu_custom_call.1} parent=259 // pred_region
            %543 = vsyncadd %s509, 16
          $region350: #{tpu_custom_call.1} parent=259 // pred_fallthru
            _
          %s544 = sadd.s32 %s412, 3
          %s545 = sld [smem:[#allocation5 + %s544]]
          %p546 = scmp.gt.s32.totalorder %s545, 0
          %s547 = scalar_select %p546, %s545, 0
          %p548 = scmp.lt.s32.totalorder %s547, 63
          %s549 = scalar_select %p548, %s547, 63
          %s550 = sadd.s32 %s418, 3
          %s551 = scalar_lea.vmem %s1, %s549
          %s552 = scalar_lea.vmem [#allocation2], %s550
          %s553 = scalar_lea.sflag [#allocation3], %s550
          // Predicated region
          $region351: #{tpu_custom_call.1} parent=259 // pred_check
            _
          $region352: #{tpu_custom_call.1} parent=259 // pred_check_branch
            %555 = sbr.rel target = $region354
          $region353: #{tpu_custom_call.1} parent=259 // pred_region
            // Predicated region
            $region366: #{tpu_custom_call.1} parent=353 // pred_check
              _
            $region367: #{tpu_custom_call.1} parent=353 // pred_check_branch
              %571 = sbr.rel (0) target = $region369
            $region368: #{tpu_custom_call.1} parent=353 // pred_region
              %s573 = ssub.s32 2, 1
              loop: start=0, step=1, limit=1
              $region370: #{tpu_custom_call.1} parent=368 // loop_pre_header
                _
              $region371: #{tpu_custom_call.1} parent=368 // loop_header
                %s575 = sphi 0, %s579
                %p576 = scmp.ge.s32.totalorder %s575, 1
                %s580 = sphi %s551, %s551
                %s581 = sphi %s552, %s552
              $region372: #{tpu_custom_call.1} parent=368 // loop_header_branch
                %578 = sbr.rel (%p576) target = $region376
              $region373: #{tpu_custom_call.1} parent=368 // loop_body
                %v582 = vld [vmem:[%s580] sm:%s573]
                %583 = vst [vmem:[%s581] sm:%s573] %v582
              $region374: #{tpu_custom_call.1} parent=368 // loop_footer
                %s579 = sadd.s32 1, %s575
              $region375: #{tpu_custom_call.1} parent=368 // loop_footer_branch
                %574 = sbr.rel target = $region371
              $region376: #{tpu_custom_call.1} parent=368 // loop_exit
                _
            $region369: #{tpu_custom_call.1} parent=353 // pred_fallthru
              _
          $region354: #{tpu_custom_call.1} parent=259 // pred_fallthru
            _
          // Predicated region
          $region355: #{tpu_custom_call.1} parent=259 // pred_check
            _
          $region356: #{tpu_custom_call.1} parent=259 // pred_check_branch
            %557 = sbr.rel (0) target = $region358
          $region357: #{tpu_custom_call.1} parent=259 // pred_region
            %s559 = ssub.s32 2, 1
            loop: start=0, step=1, limit=1
            $region359: #{tpu_custom_call.1} parent=357 // loop_pre_header
              _
            $region360: #{tpu_custom_call.1} parent=357 // loop_header
              %s561 = sphi 0, %s565
              %p562 = scmp.ge.s32.totalorder %s561, 1
              %s566 = sphi %s551, %s551
              %s567 = sphi %s552, %s552
            $region361: #{tpu_custom_call.1} parent=357 // loop_header_branch
              %564 = sbr.rel (%p562) target = $region365
            $region362: #{tpu_custom_call.1} parent=357 // loop_body
              %v568 = vld [vmem:[%s566] sm:%s559]
              %569 = vst [vmem:[%s567] sm:%s559] %v568
            $region363: #{tpu_custom_call.1} parent=357 // loop_footer
              %s565 = sadd.s32 1, %s561
            $region364: #{tpu_custom_call.1} parent=357 // loop_footer_branch
              %560 = sbr.rel target = $region360
            $region365: #{tpu_custom_call.1} parent=357 // loop_exit
              _
          $region358: #{tpu_custom_call.1} parent=259 // pred_fallthru
            _
          // Predicated region
          $region377: #{tpu_custom_call.1} parent=259 // pred_check
            _
          $region378: #{tpu_custom_call.1} parent=259 // pred_check_branch
            %586 = sbr.rel (0) target = $region380
          $region379: #{tpu_custom_call.1} parent=259 // pred_region
            %587 = vsyncadd %s553, 16
          $region380: #{tpu_custom_call.1} parent=259 // pred_fallthru
            _
          %s588 = sadd.s32 %s412, 4
          %s589 = sld [smem:[#allocation5 + %s588]]
          %p590 = scmp.gt.s32.totalorder %s589, 0
          %s591 = scalar_select %p590, %s589, 0
          %p592 = scmp.lt.s32.totalorder %s591, 63
          %s593 = scalar_select %p592, %s591, 63
          %s594 = sadd.s32 %s418, 4
          %s595 = scalar_lea.vmem %s1, %s593
          %s596 = scalar_lea.vmem [#allocation2], %s594
          %s597 = scalar_lea.sflag [#allocation3], %s594
          // Predicated region
          $region381: #{tpu_custom_call.1} parent=259 // pred_check
            _
          $region382: #{tpu_custom_call.1} parent=259 // pred_check_branch
            %599 = sbr.rel target = $region384
          $region383: #{tpu_custom_call.1} parent=259 // pred_region
            // Predicated region
            $region396: #{tpu_custom_call.1} parent=383 // pred_check
              _
            $region397: #{tpu_custom_call.1} parent=383 // pred_check_branch
              %615 = sbr.rel (0) target = $region399
            $region398: #{tpu_custom_call.1} parent=383 // pred_region
              %s617 = ssub.s32 2, 1
              loop: start=0, step=1, limit=1
              $region400: #{tpu_custom_call.1} parent=398 // loop_pre_header
                _
              $region401: #{tpu_custom_call.1} parent=398 // loop_header
                %s619 = sphi 0, %s623
                %p620 = scmp.ge.s32.totalorder %s619, 1
                %s624 = sphi %s595, %s595
                %s625 = sphi %s596, %s596
              $region402: #{tpu_custom_call.1} parent=398 // loop_header_branch
                %622 = sbr.rel (%p620) target = $region406
              $region403: #{tpu_custom_call.1} parent=398 // loop_body
                %v626 = vld [vmem:[%s624] sm:%s617]
                %627 = vst [vmem:[%s625] sm:%s617] %v626
              $region404: #{tpu_custom_call.1} parent=398 // loop_footer
                %s623 = sadd.s32 1, %s619
              $region405: #{tpu_custom_call.1} parent=398 // loop_footer_branch
                %618 = sbr.rel target = $region401
              $region406: #{tpu_custom_call.1} parent=398 // loop_exit
                _
            $region399: #{tpu_custom_call.1} parent=383 // pred_fallthru
              _
          $region384: #{tpu_custom_call.1} parent=259 // pred_fallthru
            _
          // Predicated region
          $region385: #{tpu_custom_call.1} parent=259 // pred_check
            _
          $region386: #{tpu_custom_call.1} parent=259 // pred_check_branch
            %601 = sbr.rel (0) target = $region388
          $region387: #{tpu_custom_call.1} parent=259 // pred_region
            %s603 = ssub.s32 2, 1
            loop: start=0, step=1, limit=1
            $region389: #{tpu_custom_call.1} parent=387 // loop_pre_header
              _
            $region390: #{tpu_custom_call.1} parent=387 // loop_header
              %s605 = sphi 0, %s609
              %p606 = scmp.ge.s32.totalorder %s605, 1
              %s610 = sphi %s595, %s595
              %s611 = sphi %s596, %s596
            $region391: #{tpu_custom_call.1} parent=387 // loop_header_branch
              %608 = sbr.rel (%p606) target = $region395
            $region392: #{tpu_custom_call.1} parent=387 // loop_body
              %v612 = vld [vmem:[%s610] sm:%s603]
              %613 = vst [vmem:[%s611] sm:%s603] %v612
            $region393: #{tpu_custom_call.1} parent=387 // loop_footer
              %s609 = sadd.s32 1, %s605
            $region394: #{tpu_custom_call.1} parent=387 // loop_footer_branch
              %604 = sbr.rel target = $region390
            $region395: #{tpu_custom_call.1} parent=387 // loop_exit
              _
          $region388: #{tpu_custom_call.1} parent=259 // pred_fallthru
            _
          // Predicated region
          $region407: #{tpu_custom_call.1} parent=259 // pred_check
            _
          $region408: #{tpu_custom_call.1} parent=259 // pred_check_branch
            %630 = sbr.rel (0) target = $region410
          $region409: #{tpu_custom_call.1} parent=259 // pred_region
            %631 = vsyncadd %s597, 16
          $region410: #{tpu_custom_call.1} parent=259 // pred_fallthru
            _
          %s632 = sadd.s32 %s412, 5
          %s633 = sld [smem:[#allocation5 + %s632]]
          %p634 = scmp.gt.s32.totalorder %s633, 0
          %s635 = scalar_select %p634, %s633, 0
          %p636 = scmp.lt.s32.totalorder %s635, 63
          %s637 = scalar_select %p636, %s635, 63
          %s638 = sadd.s32 %s418, 5
          %s639 = scalar_lea.vmem %s1, %s637
          %s640 = scalar_lea.vmem [#allocation2], %s638
          %s641 = scalar_lea.sflag [#allocation3], %s638
          // Predicated region
          $region411: #{tpu_custom_call.1} parent=259 // pred_check
            _
          $region412: #{tpu_custom_call.1} parent=259 // pred_check_branch
            %643 = sbr.rel target = $region414
          $region413: #{tpu_custom_call.1} parent=259 // pred_region
            // Predicated region
            $region426: #{tpu_custom_call.1} parent=413 // pred_check
              _
            $region427: #{tpu_custom_call.1} parent=413 // pred_check_branch
              %659 = sbr.rel (0) target = $region429
            $region428: #{tpu_custom_call.1} parent=413 // pred_region
              %s661 = ssub.s32 2, 1
              loop: start=0, step=1, limit=1
              $region430: #{tpu_custom_call.1} parent=428 // loop_pre_header
                _
              $region431: #{tpu_custom_call.1} parent=428 // loop_header
                %s663 = sphi 0, %s667
                %p664 = scmp.ge.s32.totalorder %s663, 1
                %s668 = sphi %s639, %s639
                %s669 = sphi %s640, %s640
              $region432: #{tpu_custom_call.1} parent=428 // loop_header_branch
                %666 = sbr.rel (%p664) target = $region436
              $region433: #{tpu_custom_call.1} parent=428 // loop_body
                %v670 = vld [vmem:[%s668] sm:%s661]
                %671 = vst [vmem:[%s669] sm:%s661] %v670
              $region434: #{tpu_custom_call.1} parent=428 // loop_footer
                %s667 = sadd.s32 1, %s663
              $region435: #{tpu_custom_call.1} parent=428 // loop_footer_branch
                %662 = sbr.rel target = $region431
              $region436: #{tpu_custom_call.1} parent=428 // loop_exit
                _
            $region429: #{tpu_custom_call.1} parent=413 // pred_fallthru
              _
          $region414: #{tpu_custom_call.1} parent=259 // pred_fallthru
            _
          // Predicated region
          $region415: #{tpu_custom_call.1} parent=259 // pred_check
            _
          $region416: #{tpu_custom_call.1} parent=259 // pred_check_branch
            %645 = sbr.rel (0) target = $region418
          $region417: #{tpu_custom_call.1} parent=259 // pred_region
            %s647 = ssub.s32 2, 1
            loop: start=0, step=1, limit=1
            $region419: #{tpu_custom_call.1} parent=417 // loop_pre_header
              _
            $region420: #{tpu_custom_call.1} parent=417 // loop_header
              %s649 = sphi 0, %s653
              %p650 = scmp.ge.s32.totalorder %s649, 1
              %s654 = sphi %s639, %s639
              %s655 = sphi %s640, %s640
            $region421: #{tpu_custom_call.1} parent=417 // loop_header_branch
              %652 = sbr.rel (%p650) target = $region425
            $region422: #{tpu_custom_call.1} parent=417 // loop_body
              %v656 = vld [vmem:[%s654] sm:%s647]
              %657 = vst [vmem:[%s655] sm:%s647] %v656
            $region423: #{tpu_custom_call.1} parent=417 // loop_footer
              %s653 = sadd.s32 1, %s649
            $region424: #{tpu_custom_call.1} parent=417 // loop_footer_branch
              %648 = sbr.rel target = $region420
            $region425: #{tpu_custom_call.1} parent=417 // loop_exit
              _
          $region418: #{tpu_custom_call.1} parent=259 // pred_fallthru
            _
          // Predicated region
          $region437: #{tpu_custom_call.1} parent=259 // pred_check
            _
          $region438: #{tpu_custom_call.1} parent=259 // pred_check_branch
            %674 = sbr.rel (0) target = $region440
          $region439: #{tpu_custom_call.1} parent=259 // pred_region
            %675 = vsyncadd %s641, 16
          $region440: #{tpu_custom_call.1} parent=259 // pred_fallthru
            _
          %s676 = sadd.s32 %s412, 6
          %s677 = sld [smem:[#allocation5 + %s676]]
          %p678 = scmp.gt.s32.totalorder %s677, 0
          %s679 = scalar_select %p678, %s677, 0
          %p680 = scmp.lt.s32.totalorder %s679, 63
          %s681 = scalar_select %p680, %s679, 63
          %s682 = sadd.s32 %s418, 6
          %s683 = scalar_lea.vmem %s1, %s681
          %s684 = scalar_lea.vmem [#allocation2], %s682
          %s685 = scalar_lea.sflag [#allocation3], %s682
          // Predicated region
          $region441: #{tpu_custom_call.1} parent=259 // pred_check
            _
          $region442: #{tpu_custom_call.1} parent=259 // pred_check_branch
            %687 = sbr.rel target = $region444
          $region443: #{tpu_custom_call.1} parent=259 // pred_region
            // Predicated region
            $region456: #{tpu_custom_call.1} parent=443 // pred_check
              _
            $region457: #{tpu_custom_call.1} parent=443 // pred_check_branch
              %703 = sbr.rel (0) target = $region459
            $region458: #{tpu_custom_call.1} parent=443 // pred_region
              %s705 = ssub.s32 2, 1
              loop: start=0, step=1, limit=1
              $region460: #{tpu_custom_call.1} parent=458 // loop_pre_header
                _
              $region461: #{tpu_custom_call.1} parent=458 // loop_header
                %s707 = sphi 0, %s711
                %p708 = scmp.ge.s32.totalorder %s707, 1
                %s712 = sphi %s683, %s683
                %s713 = sphi %s684, %s684
              $region462: #{tpu_custom_call.1} parent=458 // loop_header_branch
                %710 = sbr.rel (%p708) target = $region466
              $region463: #{tpu_custom_call.1} parent=458 // loop_body
                %v714 = vld [vmem:[%s712] sm:%s705]
                %715 = vst [vmem:[%s713] sm:%s705] %v714
              $region464: #{tpu_custom_call.1} parent=458 // loop_footer
                %s711 = sadd.s32 1, %s707
              $region465: #{tpu_custom_call.1} parent=458 // loop_footer_branch
                %706 = sbr.rel target = $region461
              $region466: #{tpu_custom_call.1} parent=458 // loop_exit
                _
            $region459: #{tpu_custom_call.1} parent=443 // pred_fallthru
              _
          $region444: #{tpu_custom_call.1} parent=259 // pred_fallthru
            _
          // Predicated region
          $region445: #{tpu_custom_call.1} parent=259 // pred_check
            _
          $region446: #{tpu_custom_call.1} parent=259 // pred_check_branch
            %689 = sbr.rel (0) target = $region448
          $region447: #{tpu_custom_call.1} parent=259 // pred_region
            %s691 = ssub.s32 2, 1
            loop: start=0, step=1, limit=1
            $region449: #{tpu_custom_call.1} parent=447 // loop_pre_header
              _
            $region450: #{tpu_custom_call.1} parent=447 // loop_header
              %s693 = sphi 0, %s697
              %p694 = scmp.ge.s32.totalorder %s693, 1
              %s698 = sphi %s683, %s683
              %s699 = sphi %s684, %s684
            $region451: #{tpu_custom_call.1} parent=447 // loop_header_branch
              %696 = sbr.rel (%p694) target = $region455
            $region452: #{tpu_custom_call.1} parent=447 // loop_body
              %v700 = vld [vmem:[%s698] sm:%s691]
              %701 = vst [vmem:[%s699] sm:%s691] %v700
            $region453: #{tpu_custom_call.1} parent=447 // loop_footer
              %s697 = sadd.s32 1, %s693
            $region454: #{tpu_custom_call.1} parent=447 // loop_footer_branch
              %692 = sbr.rel target = $region450
            $region455: #{tpu_custom_call.1} parent=447 // loop_exit
              _
          $region448: #{tpu_custom_call.1} parent=259 // pred_fallthru
            _
          // Predicated region
          $region467: #{tpu_custom_call.1} parent=259 // pred_check
            _
          $region468: #{tpu_custom_call.1} parent=259 // pred_check_branch
            %718 = sbr.rel (0) target = $region470
          $region469: #{tpu_custom_call.1} parent=259 // pred_region
            %719 = vsyncadd %s685, 16
          $region470: #{tpu_custom_call.1} parent=259 // pred_fallthru
            _
          %s720 = sadd.s32 %s412, 7
          %s721 = sld [smem:[#allocation5 + %s720]]
          %p722 = scmp.gt.s32.totalorder %s721, 0
          %s723 = scalar_select %p722, %s721, 0
          %p724 = scmp.lt.s32.totalorder %s723, 63
          %s725 = scalar_select %p724, %s723, 63
          %s726 = sadd.s32 %s418, 7
          %s727 = scalar_lea.vmem %s1, %s725
          %s728 = scalar_lea.vmem [#allocation2], %s726
          %s729 = scalar_lea.sflag [#allocation3], %s726
          // Predicated region
          $region471: #{tpu_custom_call.1} parent=259 // pred_check
            _
          $region472: #{tpu_custom_call.1} parent=259 // pred_check_branch
            %731 = sbr.rel target = $region474
          $region473: #{tpu_custom_call.1} parent=259 // pred_region
            // Predicated region
            $region486: #{tpu_custom_call.1} parent=473 // pred_check
              _
            $region487: #{tpu_custom_call.1} parent=473 // pred_check_branch
              %747 = sbr.rel (0) target = $region489
            $region488: #{tpu_custom_call.1} parent=473 // pred_region
              %s749 = ssub.s32 2, 1
              loop: start=0, step=1, limit=1
              $region490: #{tpu_custom_call.1} parent=488 // loop_pre_header
                _
              $region491: #{tpu_custom_call.1} parent=488 // loop_header
                %s751 = sphi 0, %s755
                %p752 = scmp.ge.s32.totalorder %s751, 1
                %s756 = sphi %s727, %s727
                %s757 = sphi %s728, %s728
              $region492: #{tpu_custom_call.1} parent=488 // loop_header_branch
                %754 = sbr.rel (%p752) target = $region496
              $region493: #{tpu_custom_call.1} parent=488 // loop_body
                %v758 = vld [vmem:[%s756] sm:%s749]
                %759 = vst [vmem:[%s757] sm:%s749] %v758
              $region494: #{tpu_custom_call.1} parent=488 // loop_footer
                %s755 = sadd.s32 1, %s751
              $region495: #{tpu_custom_call.1} parent=488 // loop_footer_branch
                %750 = sbr.rel target = $region491
              $region496: #{tpu_custom_call.1} parent=488 // loop_exit
                _
            $region489: #{tpu_custom_call.1} parent=473 // pred_fallthru
              _
          $region474: #{tpu_custom_call.1} parent=259 // pred_fallthru
            _
          // Predicated region
          $region475: #{tpu_custom_call.1} parent=259 // pred_check
            _
          $region476: #{tpu_custom_call.1} parent=259 // pred_check_branch
            %733 = sbr.rel (0) target = $region478
          $region477: #{tpu_custom_call.1} parent=259 // pred_region
            %s735 = ssub.s32 2, 1
            loop: start=0, step=1, limit=1
            $region479: #{tpu_custom_call.1} parent=477 // loop_pre_header
              _
            $region480: #{tpu_custom_call.1} parent=477 // loop_header
              %s737 = sphi 0, %s741
              %p738 = scmp.ge.s32.totalorder %s737, 1
              %s742 = sphi %s727, %s727
              %s743 = sphi %s728, %s728
            $region481: #{tpu_custom_call.1} parent=477 // loop_header_branch
              %740 = sbr.rel (%p738) target = $region485
            $region482: #{tpu_custom_call.1} parent=477 // loop_body
              %v744 = vld [vmem:[%s742] sm:%s735]
              %745 = vst [vmem:[%s743] sm:%s735] %v744
            $region483: #{tpu_custom_call.1} parent=477 // loop_footer
              %s741 = sadd.s32 1, %s737
            $region484: #{tpu_custom_call.1} parent=477 // loop_footer_branch
              %736 = sbr.rel target = $region480
            $region485: #{tpu_custom_call.1} parent=477 // loop_exit
              _
          $region478: #{tpu_custom_call.1} parent=259 // pred_fallthru
            _
          // Predicated region
          $region497: #{tpu_custom_call.1} parent=259 // pred_check
            _
          $region498: #{tpu_custom_call.1} parent=259 // pred_check_branch
            %762 = sbr.rel (0) target = $region500
          $region499: #{tpu_custom_call.1} parent=259 // pred_region
            %763 = vsyncadd %s729, 16
          $region500: #{tpu_custom_call.1} parent=259 // pred_fallthru
            _
        $region260: #{tpu_custom_call.1} parent=11 // pred_fallthru
          _
        %s764 = smul.u32 %s67, 8
        %s765 = scalar_lea.sflag [#allocation3], %s764
        %767 = dma.done %s765, 16
        %s768 = sadd.s32 %s764, 1
        %s769 = scalar_lea.sflag [#allocation3], %s768
        %771 = dma.done %s769, 16
        %s772 = sadd.s32 %s764, 2
        %s773 = scalar_lea.sflag [#allocation3], %s772
        %775 = dma.done %s773, 16
        %s776 = sadd.s32 %s764, 3
        %s777 = scalar_lea.sflag [#allocation3], %s776
        %779 = dma.done %s777, 16
        %s780 = sadd.s32 %s764, 4
        %s781 = scalar_lea.sflag [#allocation3], %s780
        %783 = dma.done %s781, 16
        %s784 = sadd.s32 %s764, 5
        %s785 = scalar_lea.sflag [#allocation3], %s784
        %787 = dma.done %s785, 16
        %s788 = sadd.s32 %s764, 6
        %s789 = scalar_lea.sflag [#allocation3], %s788
        %791 = dma.done %s789, 16
        %s792 = sadd.s32 %s764, 7
        %s793 = scalar_lea.sflag [#allocation3], %s792
        %795 = dma.done %s793, 16
        %s796 = scalar_lea.vmem [#allocation2], %s764
        %v797 = vld [vmem:[%s796] sm:$0xff]
        %v798 = vmul.f32 %v797, 5.656854
        %vm799 = vcmask 261120
        %800 = vst.msk [vmem:[%s55] sm:$0xff] %vm799, %v798
        %s801 = sand.u32 %s28, 1
        %s802 = scalar_lea.sflag [#allocation7], %s801
        %s803 = sand.u32 %s28, 1
        %s804 = smul.addr %s803, 8
        %s805 = scalar_lea.vmem [#allocation6], %s804
        // Predicated region
        $region501: #{tpu_custom_call.1} parent=11 // pred_check
          %p806 = pneg %p34
        $region502: #{tpu_custom_call.1} parent=11 // pred_check_branch
          %808 = sbr.rel (%p806) target = $region504
        $region503: #{tpu_custom_call.1} parent=11 // pred_region
          %810 = vsyncadd %s802, 0
          %s811 = smul.addr %s19, 8
          %s812 = scalar_lea.hbm %s2, %s811
          %s814 = sshll.u32 %s805, 4
          %s815 = int_to_ptr.vmem [resolvable:$true] %s814
          %s816 = sshll.u32 %s812, 4
          %s817 = int_to_ptr.hbm [resolvable:$true] %s816
          %819 = dma.vmem_to_hbm [thread:$0]  %s815, 128, %s817, %s802
        $region504: #{tpu_custom_call.1} parent=11 // pred_fallthru
          _
      $region12: #{tpu_custom_call.1} parent=5 // pred_fallthru
        _
      %p820 = scmp.le.s32.totalorder 1, %s19
      // Predicated region
      $region505: #{tpu_custom_call.1} parent=5 // pred_check
        %p821 = pneg %p820
      $region506: #{tpu_custom_call.1} parent=5 // pred_check_branch
        %823 = sbr.rel (%p821) target = $region508
      $region507: #{tpu_custom_call.1} parent=5 // pred_region
        %s824 = ssub.s32 %s19, 1
        // Predicated region
        $region509: #{tpu_custom_call.1} parent=507 // pred_check
          %p825 = pneg %p40
        $region510: #{tpu_custom_call.1} parent=507 // pred_check_branch
          %827 = sbr.rel (%p825) target = $region512
        $region511: #{tpu_custom_call.1} parent=507 // pred_region
          %s828 = sand.u32 %s31, 1
          %s829 = scalar_lea.sflag [#allocation7], %s828
          %s830 = sand.u32 %s31, 1
          %s831 = smul.addr %s830, 8
          %s832 = scalar_lea.vmem [#allocation6], %s831
          %834 = dma.done %s829, 128
        $region512: #{tpu_custom_call.1} parent=507 // pred_fallthru
          _
      $region508: #{tpu_custom_call.1} parent=5 // pred_fallthru
        _
    $region6: #{tpu_custom_call.1} parent=1 // loop_footer
      %s23 = sadd.s32 1, %s19
    $region7: #{tpu_custom_call.1} parent=1 // loop_footer_branch
      %18 = sbr.rel target = $region3
    $region8: #{tpu_custom_call.1} parent=1 // loop_exit
      _
    %835 = vsyncpa [#allocation7], 1
    %s836 = scalar_lea.sflag [#allocation7], 1
    %837 = vsyncpa %s836, 1
  %838 = vsyncmov [#allocation3]
  %s839 = vpop.sfrf %838
  %p840 = scmp.eq.s32.totalorder %s839, 0
  %p841 = pneg %p840
  %843 = shalt.err (%p841)
  %s844 = scalar_lea.sflag [#allocation3], 1
  %845 = vsyncmov %s844
  %s846 = vpop.sfrf %845
  %p847 = scmp.eq.s32.totalorder %s846, 0
  %p848 = pneg %p847
  %850 = shalt.err (%p848)
  %s851 = scalar_lea.sflag [#allocation3], 2
  %852 = vsyncmov %s851
  %s853 = vpop.sfrf %852
  %p854 = scmp.eq.s32.totalorder %s853, 0
  %p855 = pneg %p854
  %857 = shalt.err (%p855)
  %s858 = scalar_lea.sflag [#allocation3], 3
  %859 = vsyncmov %s858
  %s860 = vpop.sfrf %859
  %p861 = scmp.eq.s32.totalorder %s860, 0
  %p862 = pneg %p861
  %864 = shalt.err (%p862)
  %s865 = scalar_lea.sflag [#allocation3], 4
  %866 = vsyncmov %s865
  %s867 = vpop.sfrf %866
  %p868 = scmp.eq.s32.totalorder %s867, 0
  %p869 = pneg %p868
  %871 = shalt.err (%p869)
  %s872 = scalar_lea.sflag [#allocation3], 5
  %873 = vsyncmov %s872
  %s874 = vpop.sfrf %873
  %p875 = scmp.eq.s32.totalorder %s874, 0
  %p876 = pneg %p875
  %878 = shalt.err (%p876)
  %s879 = scalar_lea.sflag [#allocation3], 6
  %880 = vsyncmov %s879
  %s881 = vpop.sfrf %880
  %p882 = scmp.eq.s32.totalorder %s881, 0
  %p883 = pneg %p882
  %885 = shalt.err (%p883)
  %s886 = scalar_lea.sflag [#allocation3], 7
  %887 = vsyncmov %s886
  %s888 = vpop.sfrf %887
  %p889 = scmp.eq.s32.totalorder %s888, 0
  %p890 = pneg %p889
  %892 = shalt.err (%p890)
  %s893 = scalar_lea.sflag [#allocation3], 8
  %894 = vsyncmov %s893
  %s895 = vpop.sfrf %894
  %p896 = scmp.eq.s32.totalorder %s895, 0
  %p897 = pneg %p896
  %899 = shalt.err (%p897)
  %s900 = scalar_lea.sflag [#allocation3], 9
  %901 = vsyncmov %s900
  %s902 = vpop.sfrf %901
  %p903 = scmp.eq.s32.totalorder %s902, 0
  %p904 = pneg %p903
  %906 = shalt.err (%p904)
  %s907 = scalar_lea.sflag [#allocation3], 10
  %908 = vsyncmov %s907
  %s909 = vpop.sfrf %908
  %p910 = scmp.eq.s32.totalorder %s909, 0
  %p911 = pneg %p910
  %913 = shalt.err (%p911)
  %s914 = scalar_lea.sflag [#allocation3], 11
  %915 = vsyncmov %s914
  %s916 = vpop.sfrf %915
  %p917 = scmp.eq.s32.totalorder %s916, 0
  %p918 = pneg %p917
  %920 = shalt.err (%p918)
  %s921 = scalar_lea.sflag [#allocation3], 12
  %922 = vsyncmov %s921
  %s923 = vpop.sfrf %922
  %p924 = scmp.eq.s32.totalorder %s923, 0
  %p925 = pneg %p924
  %927 = shalt.err (%p925)
  %s928 = scalar_lea.sflag [#allocation3], 13
  %929 = vsyncmov %s928
  %s930 = vpop.sfrf %929
  %p931 = scmp.eq.s32.totalorder %s930, 0
  %p932 = pneg %p931
  %934 = shalt.err (%p932)
  %s935 = scalar_lea.sflag [#allocation3], 14
  %936 = vsyncmov %s935
  %s937 = vpop.sfrf %936
  %p938 = scmp.eq.s32.totalorder %s937, 0
  %p939 = pneg %p938
  %941 = shalt.err (%p939)
  %s942 = scalar_lea.sflag [#allocation3], 15
  %943 = vsyncmov %s942
  %s944 = vpop.sfrf %943
  %p945 = scmp.eq.s32.totalorder %s944, 0
  %p946 = pneg %p945
  %948 = shalt.err (%p946)

</llo_original>
